<compile_context>
chip_gen: v6e
topology: v6e:2x2x1
jax: 0.10.0
libtpu: 0.0.40
codegen_flags: <defaults>
</compile_context>

<pallas_src>
import functools

import jax
import jax.numpy as jnp
from jax import lax
from jax.experimental import pallas as pl
from jax.experimental.pallas import tpu as pltpu

TAG_PAD = 128  # lane-dense output / tag-head padding


def tagger_kernel(ids_ref, proj_f_ref, proj_b_ref, w_hh_ref, tag_w_ref, tag_b_ref,
                  out_ref, lstm_ref, *, seq_len, hidden):
    S, H = seq_len, hidden

    w_hh = w_hh_ref[...]                                   # (2H, 8H) block-diag recurrent weights

    # init_hidden() in the PyTorch module is all zeros.
    h = jnp.zeros((1, 2 * H), jnp.float32)                 # [h_fwd | h_bwd]
    c = jnp.zeros((1, 2 * H), jnp.float32)

    hs = []
    for t in range(S):                                     # static unroll: all indices compile-time
        # Precomputed per-vocab input projections (combined biases folded in), gate columns
        # [i_f i_b f_f f_b o_f o_b g_f g_b]; fwd uses token t, bwd uses token S-1-t.
        x_row = (proj_f_ref[pl.ds(ids_ref[t], 1), :] +
                 proj_b_ref[pl.ds(ids_ref[S - 1 - t], 1), :])               # (1, 8H)
        gates = jnp.dot(h, w_hh, preferred_element_type=jnp.float32) + x_row  # one MXU push/step
        sg = jax.nn.sigmoid(gates[:, :6 * H])              # i/f/o for both directions
        g_all = jnp.tanh(gates[:, 6 * H:])                 # g     for both directions
        i_all = sg[:, 0:2 * H]
        f_all = sg[:, 2 * H:4 * H]
        o_all = sg[:, 4 * H:6 * H]
        c = f_all * c + i_all * g_all                      # (1, 2H)
        h = o_all * jnp.tanh(c)                            # (1, 2H)
        hs.append(h)

    # Post-loop assembly (off the serial chain): row t = [fwd hidden of timestep t | bwd hidden
    # of timestep t]. The bwd hidden of timestep t was produced at loop step S-1-t. A lane-select
    # builds each full (1, 2H) row (no sub-vreg slicing); one static store per row fully
    # overwrites lstm_ref (every row, full width) so no zero-init is required.
    lane = lax.broadcasted_iota(jnp.int32, (1, 2 * H), 1)
    fwd_half = lane < H
    for t in range(S):
        lstm_ref[pl.ds(t, 1), :] = jnp.where(fwd_half, hs[t], hs[S - 1 - t])
    lstm_out = lstm_ref[...]                               # (S, 2H)

    # Self-attention is a provable no-op here: energy is (S, 1, 1) and softmax over the size-1
    # batch axis is exactly 1.0, so attention_out == lstm_out bit-for-bit -> elided.

    # hidden2tag (lane-padded to 128) + log_softmax over the tag axis.
    tag_space = (jnp.dot(lstm_out, tag_w_ref[...],
                         preferred_element_type=jnp.float32) + tag_b_ref[...])   # (S, 128)
    m = jnp.max(tag_space, axis=-1, keepdims=True)
    lse = jnp.log(jnp.sum(jnp.exp(tag_space - m), axis=-1, keepdims=True)) + m
    out_ref[...] = tag_space - lse


def prepare_tagger_weights(p, tag_pad=TAG_PAD):
    """One-time weight re-layout, hoisted out of the per-call path (cache the result)."""
    H = p['hidden_dim']
    T = p['tag_w'].shape[0]
    emb = p['embedding'].astype(jnp.float32)               # (V, E)
    V = emb.shape[0]

    def gate_blocks(wt):   # (rows, 4H) in torch gate order [i f g o] -> 4 x (rows, H)
        return wt[:, 0:H], wt[:, H:2 * H], wt[:, 2 * H:3 * H], wt[:, 3 * H:4 * H]

    zv = jnp.zeros((V, H), jnp.float32)

    # Per-vocab input-projection tables, gate columns [i_f i_b f_f f_b o_f o_b g_f g_b];
    # each table folds in its own direction's combined bias (b_ih + b_hh).
    pi, pf, pg, po = gate_blocks(emb @ p['w_ih_f'].T)
    bi, bf, bg, bo = gate_blocks((p['b_ih_f'] + p['b_hh_f']).reshape(1, 4 * H))
    proj_f = jnp.concatenate([pi + bi, zv, pf + bf, zv, po + bo, zv, pg + bg, zv], axis=-1)

    pi, pf, pg, po = gate_blocks(emb @ p['w_ih_b'].T)
    bi, bf, bg, bo = gate_blocks((p['b_ih_b'] + p['b_hh_b']).reshape(1, 4 * H))
    proj_b = jnp.concatenate([zv, pi + bi, zv, pf + bf, zv, po + bo, zv, pg + bg], axis=-1)

    # Block-diagonal recurrent weights (2H, 8H), same column layout; rows [0:H] multiply h_fwd,
    # rows [H:2H] multiply h_bwd.
    zh = jnp.zeros((H, H), jnp.float32)
    ih, fh, gh, oh = gate_blocks(p['w_hh_f'].T)
    w_hh_top = jnp.concatenate([ih, zh, fh, zh, oh, zh, gh, zh], axis=-1)
    ih, fh, gh, oh = gate_blocks(p['w_hh_b'].T)
    w_hh_bot = jnp.concatenate([zh, ih, zh, fh, zh, oh, zh, gh], axis=-1)
    w_hh = jnp.concatenate([w_hh_top, w_hh_bot], axis=0)   # (2H, 8H)

    # Lane-padded tag head: zero W pads, -1e30 bias pads -> exact f32 log_softmax on [:T].
    tag_w = jnp.zeros((2 * H, tag_pad), jnp.float32).at[:, :T].set(p['tag_w'].T)
    tag_b = jnp.full((1, tag_pad), -1e30, jnp.float32).at[0, :T].set(p['tag_b'])

    return dict(proj_f=proj_f, proj_b=proj_b, w_hh=w_hh, tag_w=tag_w, tag_b=tag_b)


def make_tagger_forward(params, tag_pad=TAG_PAD):
    prep = prepare_tagger_weights(params, tag_pad)         # runs ONCE, not per forward call
    H = params['hidden_dim']
    T = params['tag_w'].shape[0]

    @jax.jit
    def forward(sentence):
        S = int(sentence.shape[0])
        kernel = functools.partial(tagger_kernel, seq_len=S, hidden=H)
        smem = pl.BlockSpec(memory_space=pltpu.MemorySpace.SMEM)
        vmem = pl.BlockSpec(memory_space=pltpu.MemorySpace.VMEM)
        cost = pl.CostEstimate(
            flops=2 * S * (2 * H) * (8 * H) + 2 * S * (2 * H) * tag_pad,
            transcendentals=S * (10 * H + tag_pad),
            bytes_accessed=4 * (prep['proj_f'].size + prep['proj_b'].size + prep['w_hh'].size
                                + prep['tag_w'].size + prep['tag_b'].size + S * tag_pad) + 4 * S,
        )
        out_pad = pl.pallas_call(
            kernel,
            out_shape=jax.ShapeDtypeStruct((S, tag_pad), jnp.float32),
            in_specs=[smem, vmem, vmem, vmem, vmem, vmem],
            out_specs=vmem,
            scratch_shapes=[pltpu.VMEM((S, 2 * H), jnp.float32)],   # lstm_out assembly slab
            cost_estimate=cost,
        )(sentence.astype(jnp.int32), prep['proj_f'], prep['proj_b'],
          prep['w_hh'], prep['tag_w'], prep['tag_b'])
        return out_pad[:, :T]

    return forward


def init_params(key, vocab_size, embedding_dim, hidden_dim, tagset_size):
    ks = jax.random.split(key, 16)
    H, E = hidden_dim, embedding_dim

    def u(k, shape, scale):
        return jax.random.uniform(k, shape, jnp.float32, -scale, scale)

    s_lstm = 1.0 / float(jnp.sqrt(float(H)))
    s_attn1 = 1.0 / float(jnp.sqrt(float(2 * H)))
    s_attn2 = 1.0 / float(jnp.sqrt(64.0))
    s_tag = 1.0 / float(jnp.sqrt(float(2 * H)))
    return dict(
        hidden_dim=H,
        # "pretrained_weight" copied into nn.Embedding -> deterministic synthetic table
        embedding=jax.random.normal(ks[0], (vocab_size, E), jnp.float32),
        w_ih_f=u(ks[1], (4 * H, E), s_lstm), w_hh_f=u(ks[2], (4 * H, H), s_lstm),
        b_ih_f=u(ks[3], (4 * H,), s_lstm),   b_hh_f=u(ks[4], (4 * H,), s_lstm),
        w_ih_b=u(ks[5], (4 * H, E), s_lstm), w_hh_b=u(ks[6], (4 * H, H), s_lstm),
        b_ih_b=u(ks[7], (4 * H,), s_lstm),   b_hh_b=u(ks[8], (4 * H,), s_lstm),
        attn_w1=u(ks[9], (64, 2 * H), s_attn1), attn_b1=u(ks[10], (64,), s_attn1),
        attn_w2=u(ks[11], (1, 64), s_attn2),    attn_b2=u(ks[12], (1,), s_attn2),
        tag_w=u(ks[13], (tagset_size, 2 * H), s_tag),
        tag_b=u(ks[14], (tagset_size,), s_tag),
    )


def reference_forward(sentence, p):
    """Pure-JAX reference mirroring the PyTorch forward (incl. the no-op attention)."""
    embeds = p['embedding'][sentence].astype(jnp.float32)
    S = embeds.shape[0]
    H = p['hidden_dim']

    def run_dir(wi, wh, bi, bh, reverse):
        wi_t, wh_t, b = wi.T, wh.T, (bi + bh).reshape(1, -1)
        h = jnp.zeros((1, H), jnp.float32)
        c = jnp.zeros((1, H), jnp.float32)
        outs = [None] * S
        order = range(S - 1, -1, -1) if reverse else range(S)
        for t in order:
            x = embeds[t:t + 1]
            gates = x @ wi_t + h @ wh_t + b
            i = jax.nn.sigmoid(gates[:, :H])
            f = jax.nn.sigmoid(gates[:, H:2 * H])
            g = jnp.tanh(gates[:, 2 * H:3 * H])
            o = jax.nn.sigmoid(gates[:, 3 * H:])
            c = f * c + i * g
            h = o * jnp.tanh(c)
            outs[t] = h
        return jnp.concatenate(outs, axis=0)

    out_f = run_dir(p['w_ih_f'], p['w_hh_f'], p['b_ih_f'], p['b_hh_f'], False)
    out_b = run_dir(p['w_ih_b'], p['w_hh_b'], p['b_ih_b'], p['b_hh_b'], True)
    lstm_out = jnp.concatenate([out_f, out_b], axis=-1)           # (S, 2H)

    hid = jnp.maximum(lstm_out @ p['attn_w1'].T + p['attn_b1'], 0.0)
    energy = hid @ p['attn_w2'].T + p['attn_b2']                  # (S, 1)
    weights = jax.nn.softmax(energy, axis=1)                      # softmax over size-1 axis -> 1.0
    attn_out = lstm_out * weights

    tag_space = attn_out @ p['tag_w'].T + p['tag_b']
    return jax.nn.log_softmax(tag_space, axis=-1)


if __name__ == "__main__":
    vocab_size, embedding_dim, hidden_dim, tagset_size, seq_len = 50, 16, 32, 5, 8

    key = jax.random.PRNGKey(0)
    kp, ks = jax.random.split(key)
    params = init_params(kp, vocab_size, embedding_dim, hidden_dim, tagset_size)
    sentence = jax.random.randint(ks, (seq_len,), 0, vocab_size, dtype=jnp.int32)

    tagger_forward = make_tagger_forward(params)   # weight re-layout hoisted & cached here
    out = jax.block_until_ready(tagger_forward(sentence))

    ref = reference_forward(sentence, params)
    assert out.shape == (seq_len, tagset_size)
    assert jnp.allclose(out, ref, atol=1e-3, rtol=1e-3), (out, ref)
    print("KERNEL_OK")
</pallas_src>

<mosaic_0001>
module attributes {stable_mosaic.version = 11 : i64} {
  func.func @tagger_kernel(%arg0: memref<8xi32, #tpu.memory_space<smem>>, %arg1: memref<50x256xf32, #tpu.memory_space<vmem>>, %arg2: memref<50x256xf32, #tpu.memory_space<vmem>>, %arg3: memref<64x256xf32, #tpu.memory_space<vmem>>, %arg4: memref<64x128xf32, #tpu.memory_space<vmem>>, %arg5: memref<1x128xf32, #tpu.memory_space<vmem>>, %arg6: memref<8x128xf32, #tpu.memory_space<vmem>>, %arg7: memref<8x64xf32, #tpu.memory_space<vmem>>) attributes {dimension_semantics = [], scalar_prefetch = 0 : i64, scratch_operands = 1 : i64, tpu.core_type = #tpu.core_type<tc>} {
    %c0 = arith.constant 0 : index
    %c0_0 = arith.constant 0 : index
    %0 = vector.load %arg3[%c0, %c0_0] : memref<64x256xf32, #tpu.memory_space<vmem>>, vector<64x256xf32>
    %cst = arith.constant 0.000000e+00 : f32
    %1 = vector.broadcast %cst : f32 to vector<1x64xf32>
    %cst_1 = arith.constant 0.000000e+00 : f32
    %2 = vector.broadcast %cst_1 : f32 to vector<1x64xf32>
    %c0_2 = arith.constant 0 : index
    %3 = memref.load %arg0[%c0_2] : memref<8xi32, #tpu.memory_space<smem>>
    %4 = arith.index_cast %3 : i32 to index
    %c0_3 = arith.constant 0 : index
    %5 = vector.load %arg1[%4, %c0_3] : memref<50x256xf32, #tpu.memory_space<vmem>>, vector<1x256xf32>
    %c7 = arith.constant 7 : index
    %6 = memref.load %arg0[%c7] : memref<8xi32, #tpu.memory_space<smem>>
    %7 = arith.index_cast %6 : i32 to index
    %c0_4 = arith.constant 0 : index
    %8 = vector.load %arg2[%7, %c0_4] : memref<50x256xf32, #tpu.memory_space<vmem>>, vector<1x256xf32>
    %9 = arith.addf %5, %8 : vector<1x256xf32>
    %cst_5 = arith.constant dense<0.000000e+00> : vector<1x256xf32>
    %10 = tpu.matmul %1, %0, %cst_5 {dimension_numbers = #tpu.dot_dimension_numbers<[1], [0], [0], [1], [0, 0, 1, 1], [], []>} : vector<1x64xf32>, vector<64x256xf32>, vector<1x256xf32> -> vector<1x256xf32>
    %11 = arith.addf %10, %9 : vector<1x256xf32>
    %12 = vector.extract_strided_slice %11 {offsets = [0, 0], sizes = [1, 192], strides = [1, 1]} : vector<1x256xf32> to vector<1x192xf32>
    %13 = arith.negf %12 : vector<1x192xf32>
    %14 = math.exp %13 : vector<1x192xf32>
    %cst_6 = arith.constant 1.000000e+00 : f32
    %15 = vector.broadcast %cst_6 : f32 to vector<1x192xf32>
    %16 = arith.addf %15, %14 : vector<1x192xf32>
    %17 = arith.divf %15, %16 : vector<1x192xf32>
    %18 = vector.extract_strided_slice %11 {offsets = [0, 192], sizes = [1, 64], strides = [1, 1]} : vector<1x256xf32> to vector<1x64xf32>
    %19 = math.tanh %18 : vector<1x64xf32>
    %20 = vector.extract_strided_slice %17 {offsets = [0, 0], sizes = [1, 64], strides = [1, 1]} : vector<1x192xf32> to vector<1x64xf32>
    %21 = vector.extract_strided_slice %17 {offsets = [0, 64], sizes = [1, 64], strides = [1, 1]} : vector<1x192xf32> to vector<1x64xf32>
    %22 = vector.extract_strided_slice %17 {offsets = [0, 128], sizes = [1, 64], strides = [1, 1]} : vector<1x192xf32> to vector<1x64xf32>
    %23 = arith.mulf %21, %2 : vector<1x64xf32>
    %24 = arith.mulf %20, %19 : vector<1x64xf32>
    %25 = arith.addf %23, %24 : vector<1x64xf32>
    %26 = math.tanh %25 : vector<1x64xf32>
    %27 = arith.mulf %22, %26 : vector<1x64xf32>
    %c1 = arith.constant 1 : index
    %28 = memref.load %arg0[%c1] : memref<8xi32, #tpu.memory_space<smem>>
    %29 = arith.index_cast %28 : i32 to index
    %c0_7 = arith.constant 0 : index
    %30 = vector.load %arg1[%29, %c0_7] : memref<50x256xf32, #tpu.memory_space<vmem>>, vector<1x256xf32>
    %c6 = arith.constant 6 : index
    %31 = memref.load %arg0[%c6] : memref<8xi32, #tpu.memory_space<smem>>
    %32 = arith.index_cast %31 : i32 to index
    %c0_8 = arith.constant 0 : index
    %33 = vector.load %arg2[%32, %c0_8] : memref<50x256xf32, #tpu.memory_space<vmem>>, vector<1x256xf32>
    %34 = arith.addf %30, %33 : vector<1x256xf32>
    %cst_9 = arith.constant dense<0.000000e+00> : vector<1x256xf32>
    %35 = tpu.matmul %27, %0, %cst_9 {dimension_numbers = #tpu.dot_dimension_numbers<[1], [0], [0], [1], [0, 0, 1, 1], [], []>} : vector<1x64xf32>, vector<64x256xf32>, vector<1x256xf32> -> vector<1x256xf32>
    %36 = arith.addf %35, %34 : vector<1x256xf32>
    %37 = vector.extract_strided_slice %36 {offsets = [0, 0], sizes = [1, 192], strides = [1, 1]} : vector<1x256xf32> to vector<1x192xf32>
    %38 = arith.negf %37 : vector<1x192xf32>
    %39 = math.exp %38 : vector<1x192xf32>
    %cst_10 = arith.constant 1.000000e+00 : f32
    %40 = vector.broadcast %cst_10 : f32 to vector<1x192xf32>
    %41 = arith.addf %40, %39 : vector<1x192xf32>
    %42 = arith.divf %40, %41 : vector<1x192xf32>
    %43 = vector.extract_strided_slice %36 {offsets = [0, 192], sizes = [1, 64], strides = [1, 1]} : vector<1x256xf32> to vector<1x64xf32>
    %44 = math.tanh %43 : vector<1x64xf32>
    %45 = vector.extract_strided_slice %42 {offsets = [0, 0], sizes = [1, 64], strides = [1, 1]} : vector<1x192xf32> to vector<1x64xf32>
    %46 = vector.extract_strided_slice %42 {offsets = [0, 64], sizes = [1, 64], strides = [1, 1]} : vector<1x192xf32> to vector<1x64xf32>
    %47 = vector.extract_strided_slice %42 {offsets = [0, 128], sizes = [1, 64], strides = [1, 1]} : vector<1x192xf32> to vector<1x64xf32>
    %48 = arith.mulf %46, %25 : vector<1x64xf32>
    %49 = arith.mulf %45, %44 : vector<1x64xf32>
    %50 = arith.addf %48, %49 : vector<1x64xf32>
    %51 = math.tanh %50 : vector<1x64xf32>
    %52 = arith.mulf %47, %51 : vector<1x64xf32>
    %c2 = arith.constant 2 : index
    %53 = memref.load %arg0[%c2] : memref<8xi32, #tpu.memory_space<smem>>
    %54 = arith.index_cast %53 : i32 to index
    %c0_11 = arith.constant 0 : index
    %55 = vector.load %arg1[%54, %c0_11] : memref<50x256xf32, #tpu.memory_space<vmem>>, vector<1x256xf32>
    %c5 = arith.constant 5 : index
    %56 = memref.load %arg0[%c5] : memref<8xi32, #tpu.memory_space<smem>>
    %57 = arith.index_cast %56 : i32 to index
    %c0_12 = arith.constant 0 : index
    %58 = vector.load %arg2[%57, %c0_12] : memref<50x256xf32, #tpu.memory_space<vmem>>, vector<1x256xf32>
    %59 = arith.addf %55, %58 : vector<1x256xf32>
    %cst_13 = arith.constant dense<0.000000e+00> : vector<1x256xf32>
    %60 = tpu.matmul %52, %0, %cst_13 {dimension_numbers = #tpu.dot_dimension_numbers<[1], [0], [0], [1], [0, 0, 1, 1], [], []>} : vector<1x64xf32>, vector<64x256xf32>, vector<1x256xf32> -> vector<1x256xf32>
    %61 = arith.addf %60, %59 : vector<1x256xf32>
    %62 = vector.extract_strided_slice %61 {offsets = [0, 0], sizes = [1, 192], strides = [1, 1]} : vector<1x256xf32> to vector<1x192xf32>
    %63 = arith.negf %62 : vector<1x192xf32>
    %64 = math.exp %63 : vector<1x192xf32>
    %cst_14 = arith.constant 1.000000e+00 : f32
    %65 = vector.broadcast %cst_14 : f32 to vector<1x192xf32>
    %66 = arith.addf %65, %64 : vector<1x192xf32>
    %67 = arith.divf %65, %66 : vector<1x192xf32>
    %68 = vector.extract_strided_slice %61 {offsets = [0, 192], sizes = [1, 64], strides = [1, 1]} : vector<1x256xf32> to vector<1x64xf32>
    %69 = math.tanh %68 : vector<1x64xf32>
    %70 = vector.extract_strided_slice %67 {offsets = [0, 0], sizes = [1, 64], strides = [1, 1]} : vector<1x192xf32> to vector<1x64xf32>
    %71 = vector.extract_strided_slice %67 {offsets = [0, 64], sizes = [1, 64], strides = [1, 1]} : vector<1x192xf32> to vector<1x64xf32>
    %72 = vector.extract_strided_slice %67 {offsets = [0, 128], sizes = [1, 64], strides = [1, 1]} : vector<1x192xf32> to vector<1x64xf32>
    %73 = arith.mulf %71, %50 : vector<1x64xf32>
    %74 = arith.mulf %70, %69 : vector<1x64xf32>
    %75 = arith.addf %73, %74 : vector<1x64xf32>
    %76 = math.tanh %75 : vector<1x64xf32>
    %77 = arith.mulf %72, %76 : vector<1x64xf32>
    %c3 = arith.constant 3 : index
    %78 = memref.load %arg0[%c3] : memref<8xi32, #tpu.memory_space<smem>>
    %79 = arith.index_cast %78 : i32 to index
    %c0_15 = arith.constant 0 : index
    %80 = vector.load %arg1[%79, %c0_15] : memref<50x256xf32, #tpu.memory_space<vmem>>, vector<1x256xf32>
    %c4 = arith.constant 4 : index
    %81 = memref.load %arg0[%c4] : memref<8xi32, #tpu.memory_space<smem>>
    %82 = arith.index_cast %81 : i32 to index
    %c0_16 = arith.constant 0 : index
    %83 = vector.load %arg2[%82, %c0_16] : memref<50x256xf32, #tpu.memory_space<vmem>>, vector<1x256xf32>
    %84 = arith.addf %80, %83 : vector<1x256xf32>
    %cst_17 = arith.constant dense<0.000000e+00> : vector<1x256xf32>
    %85 = tpu.matmul %77, %0, %cst_17 {dimension_numbers = #tpu.dot_dimension_numbers<[1], [0], [0], [1], [0, 0, 1, 1], [], []>} : vector<1x64xf32>, vector<64x256xf32>, vector<1x256xf32> -> vector<1x256xf32>
    %86 = arith.addf %85, %84 : vector<1x256xf32>
    %87 = vector.extract_strided_slice %86 {offsets = [0, 0], sizes = [1, 192], strides = [1, 1]} : vector<1x256xf32> to vector<1x192xf32>
    %88 = arith.negf %87 : vector<1x192xf32>
    %89 = math.exp %88 : vector<1x192xf32>
    %cst_18 = arith.constant 1.000000e+00 : f32
    %90 = vector.broadcast %cst_18 : f32 to vector<1x192xf32>
    %91 = arith.addf %90, %89 : vector<1x192xf32>
    %92 = arith.divf %90, %91 : vector<1x192xf32>
    %93 = vector.extract_strided_slice %86 {offsets = [0, 192], sizes = [1, 64], strides = [1, 1]} : vector<1x256xf32> to vector<1x64xf32>
    %94 = math.tanh %93 : vector<1x64xf32>
    %95 = vector.extract_strided_slice %92 {offsets = [0, 0], sizes = [1, 64], strides = [1, 1]} : vector<1x192xf32> to vector<1x64xf32>
    %96 = vector.extract_strided_slice %92 {offsets = [0, 64], sizes = [1, 64], strides = [1, 1]} : vector<1x192xf32> to vector<1x64xf32>
    %97 = vector.extract_strided_slice %92 {offsets = [0, 128], sizes = [1, 64], strides = [1, 1]} : vector<1x192xf32> to vector<1x64xf32>
    %98 = arith.mulf %96, %75 : vector<1x64xf32>
    %99 = arith.mulf %95, %94 : vector<1x64xf32>
    %100 = arith.addf %98, %99 : vector<1x64xf32>
    %101 = math.tanh %100 : vector<1x64xf32>
    %102 = arith.mulf %97, %101 : vector<1x64xf32>
    %c4_19 = arith.constant 4 : index
    %103 = memref.load %arg0[%c4_19] : memref<8xi32, #tpu.memory_space<smem>>
    %104 = arith.index_cast %103 : i32 to index
    %c0_20 = arith.constant 0 : index
    %105 = vector.load %arg1[%104, %c0_20] : memref<50x256xf32, #tpu.memory_space<vmem>>, vector<1x256xf32>
    %c3_21 = arith.constant 3 : index
    %106 = memref.load %arg0[%c3_21] : memref<8xi32, #tpu.memory_space<smem>>
    %107 = arith.index_cast %106 : i32 to index
    %c0_22 = arith.constant 0 : index
    %108 = vector.load %arg2[%107, %c0_22] : memref<50x256xf32, #tpu.memory_space<vmem>>, vector<1x256xf32>
    %109 = arith.addf %105, %108 : vector<1x256xf32>
    %cst_23 = arith.constant dense<0.000000e+00> : vector<1x256xf32>
    %110 = tpu.matmul %102, %0, %cst_23 {dimension_numbers = #tpu.dot_dimension_numbers<[1], [0], [0], [1], [0, 0, 1, 1], [], []>} : vector<1x64xf32>, vector<64x256xf32>, vector<1x256xf32> -> vector<1x256xf32>
    %111 = arith.addf %110, %109 : vector<1x256xf32>
    %112 = vector.extract_strided_slice %111 {offsets = [0, 0], sizes = [1, 192], strides = [1, 1]} : vector<1x256xf32> to vector<1x192xf32>
    %113 = arith.negf %112 : vector<1x192xf32>
    %114 = math.exp %113 : vector<1x192xf32>
    %cst_24 = arith.constant 1.000000e+00 : f32
    %115 = vector.broadcast %cst_24 : f32 to vector<1x192xf32>
    %116 = arith.addf %115, %114 : vector<1x192xf32>
    %117 = arith.divf %115, %116 : vector<1x192xf32>
    %118 = vector.extract_strided_slice %111 {offsets = [0, 192], sizes = [1, 64], strides = [1, 1]} : vector<1x256xf32> to vector<1x64xf32>
    %119 = math.tanh %118 : vector<1x64xf32>
    %120 = vector.extract_strided_slice %117 {offsets = [0, 0], sizes = [1, 64], strides = [1, 1]} : vector<1x192xf32> to vector<1x64xf32>
    %121 = vector.extract_strided_slice %117 {offsets = [0, 64], sizes = [1, 64], strides = [1, 1]} : vector<1x192xf32> to vector<1x64xf32>
    %122 = vector.extract_strided_slice %117 {offsets = [0, 128], sizes = [1, 64], strides = [1, 1]} : vector<1x192xf32> to vector<1x64xf32>
    %123 = arith.mulf %121, %100 : vector<1x64xf32>
    %124 = arith.mulf %120, %119 : vector<1x64xf32>
    %125 = arith.addf %123, %124 : vector<1x64xf32>
    %126 = math.tanh %125 : vector<1x64xf32>
    %127 = arith.mulf %122, %126 : vector<1x64xf32>
    %c5_25 = arith.constant 5 : index
    %128 = memref.load %arg0[%c5_25] : memref<8xi32, #tpu.memory_space<smem>>
    %129 = arith.index_cast %128 : i32 to index
    %c0_26 = arith.constant 0 : index
    %130 = vector.load %arg1[%129, %c0_26] : memref<50x256xf32, #tpu.memory_space<vmem>>, vector<1x256xf32>
    %c2_27 = arith.constant 2 : index
    %131 = memref.load %arg0[%c2_27] : memref<8xi32, #tpu.memory_space<smem>>
    %132 = arith.index_cast %131 : i32 to index
    %c0_28 = arith.constant 0 : index
    %133 = vector.load %arg2[%132, %c0_28] : memref<50x256xf32, #tpu.memory_space<vmem>>, vector<1x256xf32>
    %134 = arith.addf %130, %133 : vector<1x256xf32>
    %cst_29 = arith.constant dense<0.000000e+00> : vector<1x256xf32>
    %135 = tpu.matmul %127, %0, %cst_29 {dimension_numbers = #tpu.dot_dimension_numbers<[1], [0], [0], [1], [0, 0, 1, 1], [], []>} : vector<1x64xf32>, vector<64x256xf32>, vector<1x256xf32> -> vector<1x256xf32>
    %136 = arith.addf %135, %134 : vector<1x256xf32>
    %137 = vector.extract_strided_slice %136 {offsets = [0, 0], sizes = [1, 192], strides = [1, 1]} : vector<1x256xf32> to vector<1x192xf32>
    %138 = arith.negf %137 : vector<1x192xf32>
    %139 = math.exp %138 : vector<1x192xf32>
    %cst_30 = arith.constant 1.000000e+00 : f32
    %140 = vector.broadcast %cst_30 : f32 to vector<1x192xf32>
    %141 = arith.addf %140, %139 : vector<1x192xf32>
    %142 = arith.divf %140, %141 : vector<1x192xf32>
    %143 = vector.extract_strided_slice %136 {offsets = [0, 192], sizes = [1, 64], strides = [1, 1]} : vector<1x256xf32> to vector<1x64xf32>
    %144 = math.tanh %143 : vector<1x64xf32>
    %145 = vector.extract_strided_slice %142 {offsets = [0, 0], sizes = [1, 64], strides = [1, 1]} : vector<1x192xf32> to vector<1x64xf32>
    %146 = vector.extract_strided_slice %142 {offsets = [0, 64], sizes = [1, 64], strides = [1, 1]} : vector<1x192xf32> to vector<1x64xf32>
    %147 = vector.extract_strided_slice %142 {offsets = [0, 128], sizes = [1, 64], strides = [1, 1]} : vector<1x192xf32> to vector<1x64xf32>
    %148 = arith.mulf %146, %125 : vector<1x64xf32>
    %149 = arith.mulf %145, %144 : vector<1x64xf32>
    %150 = arith.addf %148, %149 : vector<1x64xf32>
    %151 = math.tanh %150 : vector<1x64xf32>
    %152 = arith.mulf %147, %151 : vector<1x64xf32>
    %c6_31 = arith.constant 6 : index
    %153 = memref.load %arg0[%c6_31] : memref<8xi32, #tpu.memory_space<smem>>
    %154 = arith.index_cast %153 : i32 to index
    %c0_32 = arith.constant 0 : index
    %155 = vector.load %arg1[%154, %c0_32] : memref<50x256xf32, #tpu.memory_space<vmem>>, vector<1x256xf32>
    %c1_33 = arith.constant 1 : index
    %156 = memref.load %arg0[%c1_33] : memref<8xi32, #tpu.memory_space<smem>>
    %157 = arith.index_cast %156 : i32 to index
    %c0_34 = arith.constant 0 : index
    %158 = vector.load %arg2[%157, %c0_34] : memref<50x256xf32, #tpu.memory_space<vmem>>, vector<1x256xf32>
    %159 = arith.addf %155, %158 : vector<1x256xf32>
    %cst_35 = arith.constant dense<0.000000e+00> : vector<1x256xf32>
    %160 = tpu.matmul %152, %0, %cst_35 {dimension_numbers = #tpu.dot_dimension_numbers<[1], [0], [0], [1], [0, 0, 1, 1], [], []>} : vector<1x64xf32>, vector<64x256xf32>, vector<1x256xf32> -> vector<1x256xf32>
    %161 = arith.addf %160, %159 : vector<1x256xf32>
    %162 = vector.extract_strided_slice %161 {offsets = [0, 0], sizes = [1, 192], strides = [1, 1]} : vector<1x256xf32> to vector<1x192xf32>
    %163 = arith.negf %162 : vector<1x192xf32>
    %164 = math.exp %163 : vector<1x192xf32>
    %cst_36 = arith.constant 1.000000e+00 : f32
    %165 = vector.broadcast %cst_36 : f32 to vector<1x192xf32>
    %166 = arith.addf %165, %164 : vector<1x192xf32>
    %167 = arith.divf %165, %166 : vector<1x192xf32>
    %168 = vector.extract_strided_slice %161 {offsets = [0, 192], sizes = [1, 64], strides = [1, 1]} : vector<1x256xf32> to vector<1x64xf32>
    %169 = math.tanh %168 : vector<1x64xf32>
    %170 = vector.extract_strided_slice %167 {offsets = [0, 0], sizes = [1, 64], strides = [1, 1]} : vector<1x192xf32> to vector<1x64xf32>
    %171 = vector.extract_strided_slice %167 {offsets = [0, 64], sizes = [1, 64], strides = [1, 1]} : vector<1x192xf32> to vector<1x64xf32>
    %172 = vector.extract_strided_slice %167 {offsets = [0, 128], sizes = [1, 64], strides = [1, 1]} : vector<1x192xf32> to vector<1x64xf32>
    %173 = arith.mulf %171, %150 : vector<1x64xf32>
    %174 = arith.mulf %170, %169 : vector<1x64xf32>
    %175 = arith.addf %173, %174 : vector<1x64xf32>
    %176 = math.tanh %175 : vector<1x64xf32>
    %177 = arith.mulf %172, %176 : vector<1x64xf32>
    %c7_37 = arith.constant 7 : index
    %178 = memref.load %arg0[%c7_37] : memref<8xi32, #tpu.memory_space<smem>>
    %179 = arith.index_cast %178 : i32 to index
    %c0_38 = arith.constant 0 : index
    %180 = vector.load %arg1[%179, %c0_38] : memref<50x256xf32, #tpu.memory_space<vmem>>, vector<1x256xf32>
    %c0_39 = arith.constant 0 : index
    %181 = memref.load %arg0[%c0_39] : memref<8xi32, #tpu.memory_space<smem>>
    %182 = arith.index_cast %181 : i32 to index
    %c0_40 = arith.constant 0 : index
    %183 = vector.load %arg2[%182, %c0_40] : memref<50x256xf32, #tpu.memory_space<vmem>>, vector<1x256xf32>
    %184 = arith.addf %180, %183 : vector<1x256xf32>
    %cst_41 = arith.constant dense<0.000000e+00> : vector<1x256xf32>
    %185 = tpu.matmul %177, %0, %cst_41 {dimension_numbers = #tpu.dot_dimension_numbers<[1], [0], [0], [1], [0, 0, 1, 1], [], []>} : vector<1x64xf32>, vector<64x256xf32>, vector<1x256xf32> -> vector<1x256xf32>
    %186 = arith.addf %185, %184 : vector<1x256xf32>
    %187 = vector.extract_strided_slice %186 {offsets = [0, 0], sizes = [1, 192], strides = [1, 1]} : vector<1x256xf32> to vector<1x192xf32>
    %188 = arith.negf %187 : vector<1x192xf32>
    %189 = math.exp %188 : vector<1x192xf32>
    %cst_42 = arith.constant 1.000000e+00 : f32
    %190 = vector.broadcast %cst_42 : f32 to vector<1x192xf32>
    %191 = arith.addf %190, %189 : vector<1x192xf32>
    %192 = arith.divf %190, %191 : vector<1x192xf32>
    %193 = vector.extract_strided_slice %186 {offsets = [0, 192], sizes = [1, 64], strides = [1, 1]} : vector<1x256xf32> to vector<1x64xf32>
    %194 = math.tanh %193 : vector<1x64xf32>
    %195 = vector.extract_strided_slice %192 {offsets = [0, 0], sizes = [1, 64], strides = [1, 1]} : vector<1x192xf32> to vector<1x64xf32>
    %196 = vector.extract_strided_slice %192 {offsets = [0, 64], sizes = [1, 64], strides = [1, 1]} : vector<1x192xf32> to vector<1x64xf32>
    %197 = vector.extract_strided_slice %192 {offsets = [0, 128], sizes = [1, 64], strides = [1, 1]} : vector<1x192xf32> to vector<1x64xf32>
    %198 = arith.mulf %196, %175 : vector<1x64xf32>
    %199 = arith.mulf %195, %194 : vector<1x64xf32>
    %200 = arith.addf %198, %199 : vector<1x64xf32>
    %201 = math.tanh %200 : vector<1x64xf32>
    %202 = arith.mulf %197, %201 : vector<1x64xf32>
    %203 = tpu.iota {dimensions = array<i32: 1>} : vector<1x64xi32>
    %c32_i32 = arith.constant 32 : i32
    %204 = vector.broadcast %c32_i32 : i32 to vector<1x64xi32>
    %205 = arith.cmpi slt, %203, %204 : vector<1x64xi32>
    %206 = arith.select %205, %27, %202 : vector<1x64xi1>, vector<1x64xf32>
    %c0_43 = arith.constant 0 : index
    %c0_44 = arith.constant 0 : index
    %207 = vector.load %arg7[%c0_43, %c0_44] : memref<8x64xf32, #tpu.memory_space<vmem>>, vector<1x64xf32>
    tpu.vector_store %arg7[%c0_43, %c0_44], %206 {strides = array<i32>} : memref<8x64xf32, #tpu.memory_space<vmem>>, vector<1x64xf32>,
    %208 = arith.select %205, %52, %177 : vector<1x64xi1>, vector<1x64xf32>
    %c1_45 = arith.constant 1 : index
    %c0_46 = arith.constant 0 : index
    %209 = vector.load %arg7[%c1_45, %c0_46] : memref<8x64xf32, #tpu.memory_space<vmem>>, vector<1x64xf32>
    tpu.vector_store %arg7[%c1_45, %c0_46], %208 {strides = array<i32>} : memref<8x64xf32, #tpu.memory_space<vmem>>, vector<1x64xf32>,
    %210 = arith.select %205, %77, %152 : vector<1x64xi1>, vector<1x64xf32>
    %c2_47 = arith.constant 2 : index
    %c0_48 = arith.constant 0 : index
    %211 = vector.load %arg7[%c2_47, %c0_48] : memref<8x64xf32, #tpu.memory_space<vmem>>, vector<1x64xf32>
    tpu.vector_store %arg7[%c2_47, %c0_48], %210 {strides = array<i32>} : memref<8x64xf32, #tpu.memory_space<vmem>>, vector<1x64xf32>,
    %212 = arith.select %205, %102, %127 : vector<1x64xi1>, vector<1x64xf32>
    %c3_49 = arith.constant 3 : index
    %c0_50 = arith.constant 0 : index
    %213 = vector.load %arg7[%c3_49, %c0_50] : memref<8x64xf32, #tpu.memory_space<vmem>>, vector<1x64xf32>
    tpu.vector_store %arg7[%c3_49, %c0_50], %212 {strides = array<i32>} : memref<8x64xf32, #tpu.memory_space<vmem>>, vector<1x64xf32>,
    %214 = arith.select %205, %127, %102 : vector<1x64xi1>, vector<1x64xf32>
    %c4_51 = arith.constant 4 : index
    %c0_52 = arith.constant 0 : index
    %215 = vector.load %arg7[%c4_51, %c0_52] : memref<8x64xf32, #tpu.memory_space<vmem>>, vector<1x64xf32>
    tpu.vector_store %arg7[%c4_51, %c0_52], %214 {strides = array<i32>} : memref<8x64xf32, #tpu.memory_space<vmem>>, vector<1x64xf32>,
    %216 = arith.select %205, %152, %77 : vector<1x64xi1>, vector<1x64xf32>
    %c5_53 = arith.constant 5 : index
    %c0_54 = arith.constant 0 : index
    %217 = vector.load %arg7[%c5_53, %c0_54] : memref<8x64xf32, #tpu.memory_space<vmem>>, vector<1x64xf32>
    tpu.vector_store %arg7[%c5_53, %c0_54], %216 {strides = array<i32>} : memref<8x64xf32, #tpu.memory_space<vmem>>, vector<1x64xf32>,
    %218 = arith.select %205, %177, %52 : vector<1x64xi1>, vector<1x64xf32>
    %c6_55 = arith.constant 6 : index
    %c0_56 = arith.constant 0 : index
    %219 = vector.load %arg7[%c6_55, %c0_56] : memref<8x64xf32, #tpu.memory_space<vmem>>, vector<1x64xf32>
    tpu.vector_store %arg7[%c6_55, %c0_56], %218 {strides = array<i32>} : memref<8x64xf32, #tpu.memory_space<vmem>>, vector<1x64xf32>,
    %220 = arith.select %205, %202, %27 : vector<1x64xi1>, vector<1x64xf32>
    %c7_57 = arith.constant 7 : index
    %c0_58 = arith.constant 0 : index
    %221 = vector.load %arg7[%c7_57, %c0_58] : memref<8x64xf32, #tpu.memory_space<vmem>>, vector<1x64xf32>
    tpu.vector_store %arg7[%c7_57, %c0_58], %220 {strides = array<i32>} : memref<8x64xf32, #tpu.memory_space<vmem>>, vector<1x64xf32>,
    %c0_59 = arith.constant 0 : index
    %c0_60 = arith.constant 0 : index
    %222 = vector.load %arg7[%c0_59, %c0_60] : memref<8x64xf32, #tpu.memory_space<vmem>>, vector<8x64xf32>
    %c0_61 = arith.constant 0 : index
    %c0_62 = arith.constant 0 : index
    %223 = vector.load %arg4[%c0_61, %c0_62] : memref<64x128xf32, #tpu.memory_space<vmem>>, vector<64x128xf32>
    %cst_63 = arith.constant dense<0.000000e+00> : vector<8x128xf32>
    %224 = tpu.matmul %222, %223, %cst_63 {dimension_numbers = #tpu.dot_dimension_numbers<[1], [0], [0], [1], [0, 0, 1, 1], [], []>} : vector<8x64xf32>, vector<64x128xf32>, vector<8x128xf32> -> vector<8x128xf32>
    %c0_64 = arith.constant 0 : index
    %c0_65 = arith.constant 0 : index
    %225 = vector.load %arg5[%c0_64, %c0_65] : memref<1x128xf32, #tpu.memory_space<vmem>>, vector<1x128xf32>
    %226 = vector.broadcast %225 : vector<1x128xf32> to vector<8x128xf32>
    %227 = arith.addf %224, %226 : vector<8x128xf32>
    %cst_66 = arith.constant dense<0xFF800000> : vector<8xf32>
    %228 = vector.multi_reduction <maximumf>, %227, %cst_66 [1] : vector<8x128xf32> to vector<8xf32>
    %229 = vector.shape_cast %228 : vector<8xf32> to vector<8x1xf32>
    %230 = vector.broadcast %229 : vector<8x1xf32> to vector<8x128xf32>
    %231 = arith.subf %227, %230 : vector<8x128xf32>
    %232 = math.exp %231 : vector<8x128xf32>
    %cst_67 = arith.constant dense<0.000000e+00> : vector<8xf32>
    %233 = vector.multi_reduction <add>, %232, %cst_67 [1] : vector<8x128xf32> to vector<8xf32>
    %234 = vector.shape_cast %233 : vector<8xf32> to vector<8x1xf32>
    %235 = math.log %234 : vector<8x1xf32>
    %236 = arith.addf %235, %229 : vector<8x1xf32>
    %237 = vector.broadcast %236 : vector<8x1xf32> to vector<8x128xf32>
    %238 = arith.subf %227, %237 : vector<8x128xf32>
    %c0_68 = arith.constant 0 : index
    %c0_69 = arith.constant 0 : index
    %239 = vector.load %arg6[%c0_68, %c0_69] : memref<8x128xf32, #tpu.memory_space<vmem>>, vector<8x128xf32>
    tpu.vector_store %arg6[%c0_68, %c0_69], %238 {strides = array<i32>} : memref<8x128xf32, #tpu.memory_space<vmem>>, vector<8x128xf32>,
    return
  }
}

</mosaic_0001>

<llo_original>
// kernel: forward.1
$region0: #{forward.1}
  #allocation0 [shape = 'u32[]', space=smem, size = 0x4, offset = 0x4, fixed_abs, tag = 'smem constant byte address 0x4 - core index']
  #allocation1 [shape = 'u32[144,128]{1,0:T(1,128)}', space=vmem, size = 0x12000, scoped, tag = 'internal scratch']
  #allocation2 [shape = 'f32[8,64]{1,0:T(8,128)}', space=vmem, size = 0x1000, scoped, tag = 'scratch operand']
  %s0 = inlined_call_operand.hbm [shape: s32[8], index: 0, kind: input, shape index: {}]
  %s1 = inlined_call_operand.hbm [shape: f32[50,256], index: 1, kind: input, shape index: {}]
  %s2 = inlined_call_operand.hbm [shape: f32[50,256], index: 2, kind: input, shape index: {}]
  %s3 = inlined_call_operand.hbm [shape: f32[64,256], index: 3, kind: input, shape index: {}]
  %s4 = inlined_call_operand.hbm [shape: f32[64,128], index: 4, kind: input, shape index: {}]
  %s5 = inlined_call_operand.vmem [shape: f32[1,128], index: 5, kind: input, shape index: {}]
  %s6 = inlined_call_operand.hbm [shape: f32[8,128], index: 6, kind: output, shape index: {}]
  %s7 = sld [smem:[#allocation0]]
  $region54: #{forward.1} parent=0
    _
  %s9 = ssub.s32 1, %s7
  %s10 = scalar_select 0, %s9, %s7
  $region1: #{forward.1} parent=0
    #allocation3 [shape = 'u8[512]{0}', space=smem, size = 0x200, scoped, tag = 'input window, operand 0, single buffered']
    #allocation4 [shape = 's32[1]{0}', space=sflag, size = 0x4, scoped, tag = 'scoped memory for forward.1']
    #allocation5 [shape = 's32[1]{0}', space=sflag, size = 0x4, scoped, tag = 'scoped memory for forward.1']
    #allocation6 [shape = 's32[1]{0}', space=sflag, size = 0x4, scoped, tag = 'scoped memory for forward.1']
    #allocation7 [shape = 'u8[57344]{0}', space=vmem, size = 0xe000, scoped, tag = 'input window, operand 1, single buffered']
    #allocation8 [shape = 'u8[57344]{0}', space=vmem, size = 0xe000, scoped, tag = 'input window, operand 2, single buffered']
    #allocation9 [shape = 's32[1]{0}', space=sflag, size = 0x4, scoped, tag = 'scoped memory for forward.1']
    #allocation10 [shape = 'u8[65536]{0}', space=vmem, size = 0x10000, scoped, tag = 'input window, operand 3, single buffered']
    #allocation11 [shape = 'u8[32768]{0}', space=vmem, size = 0x8000, scoped, tag = 'input window, operand 4, single buffered']
    #allocation12 [shape = 's32[1]{0}', space=sflag, size = 0x4, scoped, tag = 'scoped memory for forward.1']
    #allocation13 [shape = 'u8[4096]{0}', space=vmem, size = 0x1000, scoped, tag = 'output window, operand 0, single buffered']
    %11 = vsyncpa [#allocation6], 0
    %12 = vsyncpa [#allocation4], 0
    %13 = vsyncpa [#allocation9], 0
    %14 = vsyncpa [#allocation12], 0
    %15 = vsyncpa [#allocation5], 0
    // Predicated region
    $region2: #{forward.1} parent=1 // pred_check
      _
    $region3: #{forward.1} parent=1 // pred_check_branch
      %17 = sbr.rel (0) target = $region5
    $region4: #{forward.1} parent=1 // pred_region
      %s19 = ssub.s32 16, 16
      %20 = vsyncadd [#allocation6], %s19
      %23 = dma.hbm_to_smem %s0, 16, [#allocation3], [#allocation6]
    $region5: #{forward.1} parent=1 // pred_fallthru
      _
    // Predicated region
    $region6: #{forward.1} parent=1 // pred_check
      _
    $region7: #{forward.1} parent=1 // pred_check_branch
      %25 = sbr.rel (0) target = $region9
    $region8: #{forward.1} parent=1 // pred_region
      %s27 = ssub.s32 1792, 1792
      %28 = vsyncadd [#allocation4], %s27
      %s29 = sshll.u32 [#allocation7], 4
      %s30 = int_to_ptr.vmem [resolvable:$true] %s29
      %35 = dma.hbm_to_vmem [thread:$0]  %s1, 1792, %s30, [#allocation4], 256, 256, 16
    $region9: #{forward.1} parent=1 // pred_fallthru
      _
    // Predicated region
    $region10: #{forward.1} parent=1 // pred_check
      _
    $region11: #{forward.1} parent=1 // pred_check_branch
      %37 = sbr.rel (0) target = $region13
    $region12: #{forward.1} parent=1 // pred_region
      %s39 = ssub.s32 1792, 1792
      %40 = vsyncadd [#allocation9], %s39
      %s41 = sshll.u32 [#allocation8], 4
      %s42 = int_to_ptr.vmem [resolvable:$true] %s41
      %47 = dma.hbm_to_vmem [thread:$0]  %s2, 1792, %s42, [#allocation9], 256, 256, 16
    $region13: #{forward.1} parent=1 // pred_fallthru
      _
    // Predicated region
    $region14: #{forward.1} parent=1 // pred_check
      _
    $region15: #{forward.1} parent=1 // pred_check_branch
      %49 = sbr.rel (0) target = $region17
    $region16: #{forward.1} parent=1 // pred_region
      %s51 = ssub.s32 2048, 2048
      %52 = vsyncadd [#allocation9], %s51
      %s53 = sshll.u32 [#allocation10], 4
      %s54 = int_to_ptr.vmem [resolvable:$true] %s53
      %59 = dma.hbm_to_vmem [thread:$0]  %s3, 2048, %s54, [#allocation9], 256, 256, 16
    $region17: #{forward.1} parent=1 // pred_fallthru
      _
    // Predicated region
    $region18: #{forward.1} parent=1 // pred_check
      _
    $region19: #{forward.1} parent=1 // pred_check_branch
      %61 = sbr.rel (0) target = $region21
    $region20: #{forward.1} parent=1 // pred_region
      %s63 = ssub.s32 1024, 1024
      %64 = vsyncadd [#allocation12], %s63
      %s65 = sshll.u32 [#allocation11], 4
      %s66 = int_to_ptr.vmem [resolvable:$true] %s65
      %71 = dma.hbm_to_vmem [thread:$0]  %s4, 1024, %s66, [#allocation12], 128, 128, 8
    $region21: #{forward.1} parent=1 // pred_fallthru
      _
    // Predicated region
    $region22: #{forward.1} parent=1 // pred_check
      _
    $region23: #{forward.1} parent=1 // pred_check_branch
      %73 = sbr.rel (0) target = $region25
    $region24: #{forward.1} parent=1 // pred_region
      _
    $region25: #{forward.1} parent=1 // pred_fallthru
      _
    // Predicated region
    $region26: #{forward.1} parent=1 // pred_check
      _
    $region27: #{forward.1} parent=1 // pred_check_branch
      %75 = sbr.rel (0) target = $region29
    $region28: #{forward.1} parent=1 // pred_region
      %76 = dma.done [#allocation6], 16
    $region29: #{forward.1} parent=1 // pred_fallthru
      _
    // Predicated region
    $region30: #{forward.1} parent=1 // pred_check
      _
    $region31: #{forward.1} parent=1 // pred_check_branch
      %78 = sbr.rel (0) target = $region33
    $region32: #{forward.1} parent=1 // pred_region
      %79 = dma.done [#allocation4], 1792
    $region33: #{forward.1} parent=1 // pred_fallthru
      _
    // Predicated region
    $region34: #{forward.1} parent=1 // pred_check
      _
    $region35: #{forward.1} parent=1 // pred_check_branch
      %81 = sbr.rel (0) target = $region37
    $region36: #{forward.1} parent=1 // pred_region
      %82 = dma.done [#allocation9], 1792
    $region37: #{forward.1} parent=1 // pred_fallthru
      _
    // Predicated region
    $region38: #{forward.1} parent=1 // pred_check
      _
    $region39: #{forward.1} parent=1 // pred_check_branch
      %84 = sbr.rel (0) target = $region41
    $region40: #{forward.1} parent=1 // pred_region
      %85 = dma.done [#allocation9], 2048
    $region41: #{forward.1} parent=1 // pred_fallthru
      _
    // Predicated region
    $region42: #{forward.1} parent=1 // pred_check
      _
    $region43: #{forward.1} parent=1 // pred_check_branch
      %87 = sbr.rel (0) target = $region45
    $region44: #{forward.1} parent=1 // pred_region
      %88 = dma.done [#allocation12], 1024
    $region45: #{forward.1} parent=1 // pred_fallthru
      _
    %89 = sfence
    %v90 = vld [vmem:[#allocation10] sm:$0xff]
    %v91 = vld [vmem:[#allocation10 + $0x8] sm:$0xff]
    %v92 = vld [vmem:[#allocation10 + $0x10] sm:$0xff]
    %v93 = vld [vmem:[#allocation10 + $0x18] sm:$0xff]
    %v94 = vld [vmem:[#allocation10 + $0x20] sm:$0xff]
    %v95 = vld [vmem:[#allocation10 + $0x28] sm:$0xff]
    %v96 = vld [vmem:[#allocation10 + $0x30] sm:$0xff]
    %v97 = vld [vmem:[#allocation10 + $0x38] sm:$0xff]
    %v98 = vld [vmem:[#allocation10 + $0x40] sm:$0xff]
    %v99 = vld [vmem:[#allocation10 + $0x48] sm:$0xff]
    %v100 = vld [vmem:[#allocation10 + $0x50] sm:$0xff]
    %v101 = vld [vmem:[#allocation10 + $0x58] sm:$0xff]
    %v102 = vld [vmem:[#allocation10 + $0x60] sm:$0xff]
    %v103 = vld [vmem:[#allocation10 + $0x68] sm:$0xff]
    %v104 = vld [vmem:[#allocation10 + $0x70] sm:$0xff]
    %v105 = vld [vmem:[#allocation10 + $0x78] sm:$0xff]
    %s106 = sld [smem:[#allocation3]]
    %s107 = sshra.s32 %s106, 3
    %s108 = sand.u32 %s106, 7
    %s109 = sshra.s32 %s106, 3
    %s110 = sand.u32 %s106, 7
    %s111 = smul.u32 %s107, 2
    %s112 = smul.u32 %s111, 8
    %s113 = sadd.s32 %s112, %s110
    %s114 = scalar_lea.vmem [#allocation7], %s113
    %v115 = vld [vmem:[%s114] ss:$8 sm:$0x3]
    %s116 = sld [smem:[#allocation3 + $0x7]]
    %s117 = sshra.s32 %s116, 3
    %s118 = sand.u32 %s116, 7
    %s119 = sshra.s32 %s116, 3
    %s120 = sand.u32 %s116, 7
    %s121 = smul.u32 %s117, 2
    %s122 = smul.u32 %s121, 8
    %s123 = sadd.s32 %s122, %s120
    %s124 = scalar_lea.vmem [#allocation8], %s123
    %v125 = vld [vmem:[%s124] ss:$8 sm:$0x3]
    %v126 = vadd.f32 %v115, %v125
    %v128 = vlaneseq
    %v129 = vshrl.u32 %v128, 7
    %v130 = vsub.s32 0, %v129
    %v131 = vrot.slane %v126, %v130
    %v132 = vlaneseq
    %v133 = vshrl.u32 %v132, 7
    %v134 = vsub.s32 1, %v133
    %v135 = vrot.slane %v126, %v134
    %vm138 = vcmask 523264
    %v140 = vsel %vm138, 0.0, 0
    %142 = vmatprep.subr.mxu0 0.0
    %143 = vmatpush1.msra.mxu0 0.0
    %144 = vmatprep.subr.mxu0 0.0
    %145 = vmatpush1.msra.mxu0 0.0
    %146 = vmatprep.subr.mxu0 0.0
    %147 = vmatpush1.msra.mxu0 0.0
    %148 = vmatprep.subr.mxu0 0.0
    %149 = vmatpush1.msra.mxu0 0.0
    %150 = vmatprep.subr.mxu0 0.0
    %151 = vmatpush1.msra.mxu0 0.0
    %152 = vmatprep.subr.mxu0 0.0
    %153 = vmatpush1.msra.mxu0 0.0
    %154 = vmatprep.subr.mxu0 0.0
    %155 = vmatpush1.msra.mxu0 0.0
    %156 = vmatprep.subr.mxu0 0.0
    %157 = vmatpush1.msra.mxu0 0.0
    %158 = vmatprep.subr.mxu0 %v105
    %159 = vmatpush1.msra.mxu0 %v104
    %160 = vmatprep.subr.mxu0 %v103
    %161 = vmatpush1.msra.mxu0 %v102
    %162 = vmatprep.subr.mxu0 %v101
    %163 = vmatpush1.msra.mxu0 %v100
    %164 = vmatprep.subr.mxu0 %v99
    %165 = vmatpush1.msra.mxu0 %v98
    %166 = vmatprep.subr.mxu0 %v97
    %167 = vmatpush1.msra.mxu0 %v96
    %168 = vmatprep.subr.mxu0 %v95
    %169 = vmatpush1.msra.mxu0 %v94
    %170 = vmatprep.subr.mxu0 %v93
    %171 = vmatpush1.msra.mxu0 %v92
    %172 = vmatprep.subr.mxu0 %v91
    %173 = vmatpush1.msra.mxu0 %v90
    %174 = vmatprep.subr.mxu0 0.0
    %175 = vmatpush2.msra.mxu0 0.0
    %176 = vmatprep.subr.mxu0 0.0
    %177 = vmatpush2.msra.mxu0 0.0
    %178 = vmatprep.subr.mxu0 0.0
    %179 = vmatpush2.msra.mxu0 0.0
    %180 = vmatprep.subr.mxu0 0.0
    %181 = vmatpush2.msra.mxu0 0.0
    %182 = vmatprep.subr.mxu0 0.0
    %183 = vmatpush2.msra.mxu0 0.0
    %184 = vmatprep.subr.mxu0 0.0
    %185 = vmatpush2.msra.mxu0 0.0
    %186 = vmatprep.subr.mxu0 0.0
    %187 = vmatpush2.msra.mxu0 0.0
    %188 = vmatprep.subr.mxu0 0.0
    %189 = vmatpush2.msra.mxu0 0.0
    %190 = vmatprep.subr.mxu0 0.0
    %191 = vmatpush2.msra.mxu0 0.0
    %192 = vmatprep.subr.mxu0 0.0
    %193 = vmatpush2.msra.mxu0 0.0
    %194 = vmatprep.subr.mxu0 0.0
    %195 = vmatpush2.msra.mxu0 0.0
    %196 = vmatprep.subr.mxu0 0.0
    %197 = vmatpush2.msra.mxu0 0.0
    %198 = vmatprep.subr.mxu0 0.0
    %199 = vmatpush2.msra.mxu0 0.0
    %200 = vmatprep.subr.mxu0 0.0
    %201 = vmatpush2.msra.mxu0 0.0
    %202 = vmatprep.subr.mxu0 0.0
    %203 = vmatpush2.msra.mxu0 0.0
    %204 = vmatprep.subr.mxu0 0.0
    %205 = vmatpush2.msra.mxu0 0.0
    %206 = vmatprep.mubr.f32.mxu0 0.0
    %207 = vmatmul.mubr.f32.gmra.mxu0 %v140
    %v208 = vpop.f32.mrf.mxu0
    %v209 = vadd.f32 %v131, %v208
    %v210 = vpop.f32.mrf.mxu0
    %v211 = vadd.f32 %v135, %v210
    %212 = vdwg.mxu0
    %v213 = vxor.u32 %v209, 2147483648
    %v214 = vxor.u32 %v211, 2147483648
    %v215 = vmul.f32 %v213, 1.442695
    %v216 = vpow.pop %v215
    %v217 = vmul.f32 %v214, 1.442695
    %v218 = vpow.pop %v217
    %v219 = vadd.f32 %v216, 1.0
    %v220 = vadd.f32 %v218, 1.0
    %v221 = vrcp.pop %v219
    %v222 = vmul.f32 1.0, %v221
    %v223 = vrcp.pop %v220
    %v224 = vmul.f32 1.0, %v223
    %v225 = vtanh.pop %v211
    %v226 = vmul.f32 %v222, 0.0
    %228 = vrot.lane.b32.xlu0 %v225, 64
    %v229 = vpop.permute.xlu0 %228
    %v231 = vmul.f32 %v222, %v229
    %233 = vrot.lane.b32.xlu0 %v231, 64
    %v234 = vpop.permute.xlu0 %233
    %v236 = vadd.f32 %v226, %v234
    %v237 = vtanh.pop %v236
    %239 = vrot.lane.b32.xlu0 %v237, 64
    %v240 = vpop.permute.xlu0 %239
    %v242 = vmul.f32 %v224, %v240
    %s243 = sld [smem:[#allocation3 + $0x1]]
    %s244 = sshra.s32 %s243, 3
    %s245 = sand.u32 %s243, 7
    %s246 = sshra.s32 %s243, 3
    %s247 = sand.u32 %s243, 7
    %s248 = smul.u32 %s244, 2
    %s249 = smul.u32 %s248, 8
    %s250 = sadd.s32 %s249, %s247
    %s251 = scalar_lea.vmem [#allocation7], %s250
    %v252 = vld [vmem:[%s251] ss:$8 sm:$0x3]
    %s253 = sld [smem:[#allocation3 + $0x6]]
    %s254 = sshra.s32 %s253, 3
    %s255 = sand.u32 %s253, 7
    %s256 = sshra.s32 %s253, 3
    %s257 = sand.u32 %s253, 7
    %s258 = smul.u32 %s254, 2
    %s259 = smul.u32 %s258, 8
    %s260 = sadd.s32 %s259, %s257
    %s261 = scalar_lea.vmem [#allocation8], %s260
    %v262 = vld [vmem:[%s261] ss:$8 sm:$0x3]
    %v263 = vadd.f32 %v252, %v262
    %v265 = vlaneseq
    %v266 = vshrl.u32 %v265, 7
    %v267 = vsub.s32 0, %v266
    %v268 = vrot.slane %v263, %v267
    %v269 = vlaneseq
    %v270 = vshrl.u32 %v269, 7
    %v271 = vsub.s32 1, %v270
    %v272 = vrot.slane %v263, %v271
    %v276 = vsel %vm138, %v242, 0
    %278 = vmatprep.subr.mxu0 0.0
    %279 = vmatpush1.msra.mxu0 0.0
    %280 = vmatprep.subr.mxu0 0.0
    %281 = vmatpush1.msra.mxu0 0.0
    %282 = vmatprep.subr.mxu0 0.0
    %283 = vmatpush1.msra.mxu0 0.0
    %284 = vmatprep.subr.mxu0 0.0
    %285 = vmatpush1.msra.mxu0 0.0
    %286 = vmatprep.subr.mxu0 0.0
    %287 = vmatpush1.msra.mxu0 0.0
    %288 = vmatprep.subr.mxu0 0.0
    %289 = vmatpush1.msra.mxu0 0.0
    %290 = vmatprep.subr.mxu0 0.0
    %291 = vmatpush1.msra.mxu0 0.0
    %292 = vmatprep.subr.mxu0 0.0
    %293 = vmatpush1.msra.mxu0 0.0
    %294 = vmatprep.subr.mxu0 %v105
    %295 = vmatpush1.msra.mxu0 %v104
    %296 = vmatprep.subr.mxu0 %v103
    %297 = vmatpush1.msra.mxu0 %v102
    %298 = vmatprep.subr.mxu0 %v101
    %299 = vmatpush1.msra.mxu0 %v100
    %300 = vmatprep.subr.mxu0 %v99
    %301 = vmatpush1.msra.mxu0 %v98
    %302 = vmatprep.subr.mxu0 %v97
    %303 = vmatpush1.msra.mxu0 %v96
    %304 = vmatprep.subr.mxu0 %v95
    %305 = vmatpush1.msra.mxu0 %v94
    %306 = vmatprep.subr.mxu0 %v93
    %307 = vmatpush1.msra.mxu0 %v92
    %308 = vmatprep.subr.mxu0 %v91
    %309 = vmatpush1.msra.mxu0 %v90
    %310 = vmatprep.subr.mxu0 0.0
    %311 = vmatpush2.msra.mxu0 0.0
    %312 = vmatprep.subr.mxu0 0.0
    %313 = vmatpush2.msra.mxu0 0.0
    %314 = vmatprep.subr.mxu0 0.0
    %315 = vmatpush2.msra.mxu0 0.0
    %316 = vmatprep.subr.mxu0 0.0
    %317 = vmatpush2.msra.mxu0 0.0
    %318 = vmatprep.subr.mxu0 0.0
    %319 = vmatpush2.msra.mxu0 0.0
    %320 = vmatprep.subr.mxu0 0.0
    %321 = vmatpush2.msra.mxu0 0.0
    %322 = vmatprep.subr.mxu0 0.0
    %323 = vmatpush2.msra.mxu0 0.0
    %324 = vmatprep.subr.mxu0 0.0
    %325 = vmatpush2.msra.mxu0 0.0
    %326 = vmatprep.subr.mxu0 0.0
    %327 = vmatpush2.msra.mxu0 0.0
    %328 = vmatprep.subr.mxu0 0.0
    %329 = vmatpush2.msra.mxu0 0.0
    %330 = vmatprep.subr.mxu0 0.0
    %331 = vmatpush2.msra.mxu0 0.0
    %332 = vmatprep.subr.mxu0 0.0
    %333 = vmatpush2.msra.mxu0 0.0
    %334 = vmatprep.subr.mxu0 0.0
    %335 = vmatpush2.msra.mxu0 0.0
    %336 = vmatprep.subr.mxu0 0.0
    %337 = vmatpush2.msra.mxu0 0.0
    %338 = vmatprep.subr.mxu0 0.0
    %339 = vmatpush2.msra.mxu0 0.0
    %340 = vmatprep.subr.mxu0 0.0
    %341 = vmatpush2.msra.mxu0 0.0
    %342 = vmatprep.mubr.f32.mxu0 0.0
    %343 = vmatmul.mubr.f32.gmra.mxu0 %v276
    %v344 = vpop.f32.mrf.mxu0
    %v345 = vadd.f32 %v268, %v344
    %v346 = vpop.f32.mrf.mxu0
    %v347 = vadd.f32 %v272, %v346
    %348 = vdwg.mxu0
    %v349 = vxor.u32 %v345, 2147483648
    %v350 = vxor.u32 %v347, 2147483648
    %v351 = vmul.f32 %v349, 1.442695
    %v352 = vpow.pop %v351
    %v353 = vmul.f32 %v350, 1.442695
    %v354 = vpow.pop %v353
    %v355 = vadd.f32 %v352, 1.0
    %v356 = vadd.f32 %v354, 1.0
    %v357 = vrcp.pop %v355
    %v358 = vmul.f32 1.0, %v357
    %v359 = vrcp.pop %v356
    %v360 = vmul.f32 1.0, %v359
    %v361 = vtanh.pop %v347
    %v362 = vmul.f32 %v358, %v236
    %364 = vrot.lane.b32.xlu0 %v361, 64
    %v365 = vpop.permute.xlu0 %364
    %v367 = vmul.f32 %v358, %v365
    %369 = vrot.lane.b32.xlu0 %v367, 64
    %v370 = vpop.permute.xlu0 %369
    %v372 = vadd.f32 %v362, %v370
    %v373 = vtanh.pop %v372
    %375 = vrot.lane.b32.xlu0 %v373, 64
    %v376 = vpop.permute.xlu0 %375
    %v378 = vmul.f32 %v360, %v376
    %s379 = sld [smem:[#allocation3 + $0x2]]
    %s380 = sshra.s32 %s379, 3
    %s381 = sand.u32 %s379, 7
    %s382 = sshra.s32 %s379, 3
    %s383 = sand.u32 %s379, 7
    %s384 = smul.u32 %s380, 2
    %s385 = smul.u32 %s384, 8
    %s386 = sadd.s32 %s385, %s383
    %s387 = scalar_lea.vmem [#allocation7], %s386
    %v388 = vld [vmem:[%s387] ss:$8 sm:$0x3]
    %s389 = sld [smem:[#allocation3 + $0x5]]
    %s390 = sshra.s32 %s389, 3
    %s391 = sand.u32 %s389, 7
    %s392 = sshra.s32 %s389, 3
    %s393 = sand.u32 %s389, 7
    %s394 = smul.u32 %s390, 2
    %s395 = smul.u32 %s394, 8
    %s396 = sadd.s32 %s395, %s393
    %s397 = scalar_lea.vmem [#allocation8], %s396
    %v398 = vld [vmem:[%s397] ss:$8 sm:$0x3]
    %v399 = vadd.f32 %v388, %v398
    %v401 = vlaneseq
    %v402 = vshrl.u32 %v401, 7
    %v403 = vsub.s32 0, %v402
    %v404 = vrot.slane %v399, %v403
    %v405 = vlaneseq
    %v406 = vshrl.u32 %v405, 7
    %v407 = vsub.s32 1, %v406
    %v408 = vrot.slane %v399, %v407
    %v412 = vsel %vm138, %v378, 0
    %414 = vmatprep.subr.mxu0 0.0
    %415 = vmatpush1.msra.mxu0 0.0
    %416 = vmatprep.subr.mxu0 0.0
    %417 = vmatpush1.msra.mxu0 0.0
    %418 = vmatprep.subr.mxu0 0.0
    %419 = vmatpush1.msra.mxu0 0.0
    %420 = vmatprep.subr.mxu0 0.0
    %421 = vmatpush1.msra.mxu0 0.0
    %422 = vmatprep.subr.mxu0 0.0
    %423 = vmatpush1.msra.mxu0 0.0
    %424 = vmatprep.subr.mxu0 0.0
    %425 = vmatpush1.msra.mxu0 0.0
    %426 = vmatprep.subr.mxu0 0.0
    %427 = vmatpush1.msra.mxu0 0.0
    %428 = vmatprep.subr.mxu0 0.0
    %429 = vmatpush1.msra.mxu0 0.0
    %430 = vmatprep.subr.mxu0 %v105
    %431 = vmatpush1.msra.mxu0 %v104
    %432 = vmatprep.subr.mxu0 %v103
    %433 = vmatpush1.msra.mxu0 %v102
    %434 = vmatprep.subr.mxu0 %v101
    %435 = vmatpush1.msra.mxu0 %v100
    %436 = vmatprep.subr.mxu0 %v99
    %437 = vmatpush1.msra.mxu0 %v98
    %438 = vmatprep.subr.mxu0 %v97
    %439 = vmatpush1.msra.mxu0 %v96
    %440 = vmatprep.subr.mxu0 %v95
    %441 = vmatpush1.msra.mxu0 %v94
    %442 = vmatprep.subr.mxu0 %v93
    %443 = vmatpush1.msra.mxu0 %v92
    %444 = vmatprep.subr.mxu0 %v91
    %445 = vmatpush1.msra.mxu0 %v90
    %446 = vmatprep.subr.mxu0 0.0
    %447 = vmatpush2.msra.mxu0 0.0
    %448 = vmatprep.subr.mxu0 0.0
    %449 = vmatpush2.msra.mxu0 0.0
    %450 = vmatprep.subr.mxu0 0.0
    %451 = vmatpush2.msra.mxu0 0.0
    %452 = vmatprep.subr.mxu0 0.0
    %453 = vmatpush2.msra.mxu0 0.0
    %454 = vmatprep.subr.mxu0 0.0
    %455 = vmatpush2.msra.mxu0 0.0
    %456 = vmatprep.subr.mxu0 0.0
    %457 = vmatpush2.msra.mxu0 0.0
    %458 = vmatprep.subr.mxu0 0.0
    %459 = vmatpush2.msra.mxu0 0.0
    %460 = vmatprep.subr.mxu0 0.0
    %461 = vmatpush2.msra.mxu0 0.0
    %462 = vmatprep.subr.mxu0 0.0
    %463 = vmatpush2.msra.mxu0 0.0
    %464 = vmatprep.subr.mxu0 0.0
    %465 = vmatpush2.msra.mxu0 0.0
    %466 = vmatprep.subr.mxu0 0.0
    %467 = vmatpush2.msra.mxu0 0.0
    %468 = vmatprep.subr.mxu0 0.0
    %469 = vmatpush2.msra.mxu0 0.0
    %470 = vmatprep.subr.mxu0 0.0
    %471 = vmatpush2.msra.mxu0 0.0
    %472 = vmatprep.subr.mxu0 0.0
    %473 = vmatpush2.msra.mxu0 0.0
    %474 = vmatprep.subr.mxu0 0.0
    %475 = vmatpush2.msra.mxu0 0.0
    %476 = vmatprep.subr.mxu0 0.0
    %477 = vmatpush2.msra.mxu0 0.0
    %478 = vmatprep.mubr.f32.mxu0 0.0
    %479 = vmatmul.mubr.f32.gmra.mxu0 %v412
    %v480 = vpop.f32.mrf.mxu0
    %v481 = vadd.f32 %v404, %v480
    %v482 = vpop.f32.mrf.mxu0
    %v483 = vadd.f32 %v408, %v482
    %484 = vdwg.mxu0
    %v485 = vxor.u32 %v481, 2147483648
    %v486 = vxor.u32 %v483, 2147483648
    %v487 = vmul.f32 %v485, 1.442695
    %v488 = vpow.pop %v487
    %v489 = vmul.f32 %v486, 1.442695
    %v490 = vpow.pop %v489
    %v491 = vadd.f32 %v488, 1.0
    %v492 = vadd.f32 %v490, 1.0
    %v493 = vrcp.pop %v491
    %v494 = vmul.f32 1.0, %v493
    %v495 = vrcp.pop %v492
    %v496 = vmul.f32 1.0, %v495
    %v497 = vtanh.pop %v483
    %v498 = vmul.f32 %v494, %v372
    %500 = vrot.lane.b32.xlu0 %v497, 64
    %v501 = vpop.permute.xlu0 %500
    %v503 = vmul.f32 %v494, %v501
    %505 = vrot.lane.b32.xlu0 %v503, 64
    %v506 = vpop.permute.xlu0 %505
    %v508 = vadd.f32 %v498, %v506
    %v509 = vtanh.pop %v508
    %511 = vrot.lane.b32.xlu0 %v509, 64
    %v512 = vpop.permute.xlu0 %511
    %v514 = vmul.f32 %v496, %v512
    %s515 = sld [smem:[#allocation3 + $0x3]]
    %s516 = sshra.s32 %s515, 3
    %s517 = sand.u32 %s515, 7
    %s518 = sshra.s32 %s515, 3
    %s519 = sand.u32 %s515, 7
    %s520 = smul.u32 %s516, 2
    %s521 = smul.u32 %s520, 8
    %s522 = sadd.s32 %s521, %s519
    %s523 = scalar_lea.vmem [#allocation7], %s522
    %v524 = vld [vmem:[%s523] ss:$8 sm:$0x3]
    %s525 = sld [smem:[#allocation3 + $0x4]]
    %s526 = sshra.s32 %s525, 3
    %s527 = sand.u32 %s525, 7
    %s528 = sshra.s32 %s525, 3
    %s529 = sand.u32 %s525, 7
    %s530 = smul.u32 %s526, 2
    %s531 = smul.u32 %s530, 8
    %s532 = sadd.s32 %s531, %s529
    %s533 = scalar_lea.vmem [#allocation8], %s532
    %v534 = vld [vmem:[%s533] ss:$8 sm:$0x3]
    %v535 = vadd.f32 %v524, %v534
    %v537 = vlaneseq
    %v538 = vshrl.u32 %v537, 7
    %v539 = vsub.s32 0, %v538
    %v540 = vrot.slane %v535, %v539
    %v541 = vlaneseq
    %v542 = vshrl.u32 %v541, 7
    %v543 = vsub.s32 1, %v542
    %v544 = vrot.slane %v535, %v543
    %v548 = vsel %vm138, %v514, 0
    %550 = vmatprep.subr.mxu0 0.0
    %551 = vmatpush1.msra.mxu0 0.0
    %552 = vmatprep.subr.mxu0 0.0
    %553 = vmatpush1.msra.mxu0 0.0
    %554 = vmatprep.subr.mxu0 0.0
    %555 = vmatpush1.msra.mxu0 0.0
    %556 = vmatprep.subr.mxu0 0.0
    %557 = vmatpush1.msra.mxu0 0.0
    %558 = vmatprep.subr.mxu0 0.0
    %559 = vmatpush1.msra.mxu0 0.0
    %560 = vmatprep.subr.mxu0 0.0
    %561 = vmatpush1.msra.mxu0 0.0
    %562 = vmatprep.subr.mxu0 0.0
    %563 = vmatpush1.msra.mxu0 0.0
    %564 = vmatprep.subr.mxu0 0.0
    %565 = vmatpush1.msra.mxu0 0.0
    %566 = vmatprep.subr.mxu0 %v105
    %567 = vmatpush1.msra.mxu0 %v104
    %568 = vmatprep.subr.mxu0 %v103
    %569 = vmatpush1.msra.mxu0 %v102
    %570 = vmatprep.subr.mxu0 %v101
    %571 = vmatpush1.msra.mxu0 %v100
    %572 = vmatprep.subr.mxu0 %v99
    %573 = vmatpush1.msra.mxu0 %v98
    %574 = vmatprep.subr.mxu0 %v97
    %575 = vmatpush1.msra.mxu0 %v96
    %576 = vmatprep.subr.mxu0 %v95
    %577 = vmatpush1.msra.mxu0 %v94
    %578 = vmatprep.subr.mxu0 %v93
    %579 = vmatpush1.msra.mxu0 %v92
    %580 = vmatprep.subr.mxu0 %v91
    %581 = vmatpush1.msra.mxu0 %v90
    %582 = vmatprep.subr.mxu0 0.0
    %583 = vmatpush2.msra.mxu0 0.0
    %584 = vmatprep.subr.mxu0 0.0
    %585 = vmatpush2.msra.mxu0 0.0
    %586 = vmatprep.subr.mxu0 0.0
    %587 = vmatpush2.msra.mxu0 0.0
    %588 = vmatprep.subr.mxu0 0.0
    %589 = vmatpush2.msra.mxu0 0.0
    %590 = vmatprep.subr.mxu0 0.0
    %591 = vmatpush2.msra.mxu0 0.0
    %592 = vmatprep.subr.mxu0 0.0
    %593 = vmatpush2.msra.mxu0 0.0
    %594 = vmatprep.subr.mxu0 0.0
    %595 = vmatpush2.msra.mxu0 0.0
    %596 = vmatprep.subr.mxu0 0.0
    %597 = vmatpush2.msra.mxu0 0.0
    %598 = vmatprep.subr.mxu0 0.0
    %599 = vmatpush2.msra.mxu0 0.0
    %600 = vmatprep.subr.mxu0 0.0
    %601 = vmatpush2.msra.mxu0 0.0
    %602 = vmatprep.subr.mxu0 0.0
    %603 = vmatpush2.msra.mxu0 0.0
    %604 = vmatprep.subr.mxu0 0.0
    %605 = vmatpush2.msra.mxu0 0.0
    %606 = vmatprep.subr.mxu0 0.0
    %607 = vmatpush2.msra.mxu0 0.0
    %608 = vmatprep.subr.mxu0 0.0
    %609 = vmatpush2.msra.mxu0 0.0
    %610 = vmatprep.subr.mxu0 0.0
    %611 = vmatpush2.msra.mxu0 0.0
    %612 = vmatprep.subr.mxu0 0.0
    %613 = vmatpush2.msra.mxu0 0.0
    %614 = vmatprep.mubr.f32.mxu0 0.0
    %615 = vmatmul.mubr.f32.gmra.mxu0 %v548
    %v616 = vpop.f32.mrf.mxu0
    %v617 = vadd.f32 %v540, %v616
    %v618 = vpop.f32.mrf.mxu0
    %v619 = vadd.f32 %v544, %v618
    %620 = vdwg.mxu0
    %v621 = vxor.u32 %v617, 2147483648
    %v622 = vxor.u32 %v619, 2147483648
    %v623 = vmul.f32 %v621, 1.442695
    %v624 = vpow.pop %v623
    %v625 = vmul.f32 %v622, 1.442695
    %v626 = vpow.pop %v625
    %v627 = vadd.f32 %v624, 1.0
    %v628 = vadd.f32 %v626, 1.0
    %v629 = vrcp.pop %v627
    %v630 = vmul.f32 1.0, %v629
    %v631 = vrcp.pop %v628
    %v632 = vmul.f32 1.0, %v631
    %v633 = vtanh.pop %v619
    %v634 = vmul.f32 %v630, %v508
    %636 = vrot.lane.b32.xlu0 %v633, 64
    %v637 = vpop.permute.xlu0 %636
    %v639 = vmul.f32 %v630, %v637
    %641 = vrot.lane.b32.xlu0 %v639, 64
    %v642 = vpop.permute.xlu0 %641
    %v644 = vadd.f32 %v634, %v642
    %v645 = vtanh.pop %v644
    %647 = vrot.lane.b32.xlu0 %v645, 64
    %v648 = vpop.permute.xlu0 %647
    %v650 = vmul.f32 %v632, %v648
    %s651 = scalar_lea.vmem [#allocation7], %s532
    %v652 = vld [vmem:[%s651] ss:$8 sm:$0x3]
    %s653 = scalar_lea.vmem [#allocation8], %s522
    %v654 = vld [vmem:[%s653] ss:$8 sm:$0x3]
    %v655 = vadd.f32 %v652, %v654
    %v657 = vlaneseq
    %v658 = vshrl.u32 %v657, 7
    %v659 = vsub.s32 0, %v658
    %v660 = vrot.slane %v655, %v659
    %v661 = vlaneseq
    %v662 = vshrl.u32 %v661, 7
    %v663 = vsub.s32 1, %v662
    %v664 = vrot.slane %v655, %v663
    %v668 = vsel %vm138, %v650, 0
    %670 = vmatprep.subr.mxu0 0.0
    %671 = vmatpush1.msra.mxu0 0.0
    %672 = vmatprep.subr.mxu0 0.0
    %673 = vmatpush1.msra.mxu0 0.0
    %674 = vmatprep.subr.mxu0 0.0
    %675 = vmatpush1.msra.mxu0 0.0
    %676 = vmatprep.subr.mxu0 0.0
    %677 = vmatpush1.msra.mxu0 0.0
    %678 = vmatprep.subr.mxu0 0.0
    %679 = vmatpush1.msra.mxu0 0.0
    %680 = vmatprep.subr.mxu0 0.0
    %681 = vmatpush1.msra.mxu0 0.0
    %682 = vmatprep.subr.mxu0 0.0
    %683 = vmatpush1.msra.mxu0 0.0
    %684 = vmatprep.subr.mxu0 0.0
    %685 = vmatpush1.msra.mxu0 0.0
    %686 = vmatprep.subr.mxu0 %v105
    %687 = vmatpush1.msra.mxu0 %v104
    %688 = vmatprep.subr.mxu0 %v103
    %689 = vmatpush1.msra.mxu0 %v102
    %690 = vmatprep.subr.mxu0 %v101
    %691 = vmatpush1.msra.mxu0 %v100
    %692 = vmatprep.subr.mxu0 %v99
    %693 = vmatpush1.msra.mxu0 %v98
    %694 = vmatprep.subr.mxu0 %v97
    %695 = vmatpush1.msra.mxu0 %v96
    %696 = vmatprep.subr.mxu0 %v95
    %697 = vmatpush1.msra.mxu0 %v94
    %698 = vmatprep.subr.mxu0 %v93
    %699 = vmatpush1.msra.mxu0 %v92
    %700 = vmatprep.subr.mxu0 %v91
    %701 = vmatpush1.msra.mxu0 %v90
    %702 = vmatprep.subr.mxu0 0.0
    %703 = vmatpush2.msra.mxu0 0.0
    %704 = vmatprep.subr.mxu0 0.0
    %705 = vmatpush2.msra.mxu0 0.0
    %706 = vmatprep.subr.mxu0 0.0
    %707 = vmatpush2.msra.mxu0 0.0
    %708 = vmatprep.subr.mxu0 0.0
    %709 = vmatpush2.msra.mxu0 0.0
    %710 = vmatprep.subr.mxu0 0.0
    %711 = vmatpush2.msra.mxu0 0.0
    %712 = vmatprep.subr.mxu0 0.0
    %713 = vmatpush2.msra.mxu0 0.0
    %714 = vmatprep.subr.mxu0 0.0
    %715 = vmatpush2.msra.mxu0 0.0
    %716 = vmatprep.subr.mxu0 0.0
    %717 = vmatpush2.msra.mxu0 0.0
    %718 = vmatprep.subr.mxu0 0.0
    %719 = vmatpush2.msra.mxu0 0.0
    %720 = vmatprep.subr.mxu0 0.0
    %721 = vmatpush2.msra.mxu0 0.0
    %722 = vmatprep.subr.mxu0 0.0
    %723 = vmatpush2.msra.mxu0 0.0
    %724 = vmatprep.subr.mxu0 0.0
    %725 = vmatpush2.msra.mxu0 0.0
    %726 = vmatprep.subr.mxu0 0.0
    %727 = vmatpush2.msra.mxu0 0.0
    %728 = vmatprep.subr.mxu0 0.0
    %729 = vmatpush2.msra.mxu0 0.0
    %730 = vmatprep.subr.mxu0 0.0
    %731 = vmatpush2.msra.mxu0 0.0
    %732 = vmatprep.subr.mxu0 0.0
    %733 = vmatpush2.msra.mxu0 0.0
    %734 = vmatprep.mubr.f32.mxu0 0.0
    %735 = vmatmul.mubr.f32.gmra.mxu0 %v668
    %v736 = vpop.f32.mrf.mxu0
    %v737 = vadd.f32 %v660, %v736
    %v738 = vpop.f32.mrf.mxu0
    %v739 = vadd.f32 %v664, %v738
    %740 = vdwg.mxu0
    %v741 = vxor.u32 %v737, 2147483648
    %v742 = vxor.u32 %v739, 2147483648
    %v743 = vmul.f32 %v741, 1.442695
    %v744 = vpow.pop %v743
    %v745 = vmul.f32 %v742, 1.442695
    %v746 = vpow.pop %v745
    %v747 = vadd.f32 %v744, 1.0
    %v748 = vadd.f32 %v746, 1.0
    %v749 = vrcp.pop %v747
    %v750 = vmul.f32 1.0, %v749
    %v751 = vrcp.pop %v748
    %v752 = vmul.f32 1.0, %v751
    %v753 = vtanh.pop %v739
    %v754 = vmul.f32 %v750, %v644
    %756 = vrot.lane.b32.xlu0 %v753, 64
    %v757 = vpop.permute.xlu0 %756
    %v759 = vmul.f32 %v750, %v757
    %761 = vrot.lane.b32.xlu0 %v759, 64
    %v762 = vpop.permute.xlu0 %761
    %v764 = vadd.f32 %v754, %v762
    %v765 = vtanh.pop %v764
    %767 = vrot.lane.b32.xlu0 %v765, 64
    %v768 = vpop.permute.xlu0 %767
    %v770 = vmul.f32 %v752, %v768
    %s771 = scalar_lea.vmem [#allocation7], %s396
    %v772 = vld [vmem:[%s771] ss:$8 sm:$0x3]
    %s773 = scalar_lea.vmem [#allocation8], %s386
    %v774 = vld [vmem:[%s773] ss:$8 sm:$0x3]
    %v775 = vadd.f32 %v772, %v774
    %v777 = vlaneseq
    %v778 = vshrl.u32 %v777, 7
    %v779 = vsub.s32 0, %v778
    %v780 = vrot.slane %v775, %v779
    %v781 = vlaneseq
    %v782 = vshrl.u32 %v781, 7
    %v783 = vsub.s32 1, %v782
    %v784 = vrot.slane %v775, %v783
    %v788 = vsel %vm138, %v770, 0
    %790 = vmatprep.subr.mxu0 0.0
    %791 = vmatpush1.msra.mxu0 0.0
    %792 = vmatprep.subr.mxu0 0.0
    %793 = vmatpush1.msra.mxu0 0.0
    %794 = vmatprep.subr.mxu0 0.0
    %795 = vmatpush1.msra.mxu0 0.0
    %796 = vmatprep.subr.mxu0 0.0
    %797 = vmatpush1.msra.mxu0 0.0
    %798 = vmatprep.subr.mxu0 0.0
    %799 = vmatpush1.msra.mxu0 0.0
    %800 = vmatprep.subr.mxu0 0.0
    %801 = vmatpush1.msra.mxu0 0.0
    %802 = vmatprep.subr.mxu0 0.0
    %803 = vmatpush1.msra.mxu0 0.0
    %804 = vmatprep.subr.mxu0 0.0
    %805 = vmatpush1.msra.mxu0 0.0
    %806 = vmatprep.subr.mxu0 %v105
    %807 = vmatpush1.msra.mxu0 %v104
    %808 = vmatprep.subr.mxu0 %v103
    %809 = vmatpush1.msra.mxu0 %v102
    %810 = vmatprep.subr.mxu0 %v101
    %811 = vmatpush1.msra.mxu0 %v100
    %812 = vmatprep.subr.mxu0 %v99
    %813 = vmatpush1.msra.mxu0 %v98
    %814 = vmatprep.subr.mxu0 %v97
    %815 = vmatpush1.msra.mxu0 %v96
    %816 = vmatprep.subr.mxu0 %v95
    %817 = vmatpush1.msra.mxu0 %v94
    %818 = vmatprep.subr.mxu0 %v93
    %819 = vmatpush1.msra.mxu0 %v92
    %820 = vmatprep.subr.mxu0 %v91
    %821 = vmatpush1.msra.mxu0 %v90
    %822 = vmatprep.subr.mxu0 0.0
    %823 = vmatpush2.msra.mxu0 0.0
    %824 = vmatprep.subr.mxu0 0.0
    %825 = vmatpush2.msra.mxu0 0.0
    %826 = vmatprep.subr.mxu0 0.0
    %827 = vmatpush2.msra.mxu0 0.0
    %828 = vmatprep.subr.mxu0 0.0
    %829 = vmatpush2.msra.mxu0 0.0
    %830 = vmatprep.subr.mxu0 0.0
    %831 = vmatpush2.msra.mxu0 0.0
    %832 = vmatprep.subr.mxu0 0.0
    %833 = vmatpush2.msra.mxu0 0.0
    %834 = vmatprep.subr.mxu0 0.0
    %835 = vmatpush2.msra.mxu0 0.0
    %836 = vmatprep.subr.mxu0 0.0
    %837 = vmatpush2.msra.mxu0 0.0
    %838 = vmatprep.subr.mxu0 0.0
    %839 = vmatpush2.msra.mxu0 0.0
    %840 = vmatprep.subr.mxu0 0.0
    %841 = vmatpush2.msra.mxu0 0.0
    %842 = vmatprep.subr.mxu0 0.0
    %843 = vmatpush2.msra.mxu0 0.0
    %844 = vmatprep.subr.mxu0 0.0
    %845 = vmatpush2.msra.mxu0 0.0
    %846 = vmatprep.subr.mxu0 0.0
    %847 = vmatpush2.msra.mxu0 0.0
    %848 = vmatprep.subr.mxu0 0.0
    %849 = vmatpush2.msra.mxu0 0.0
    %850 = vmatprep.subr.mxu0 0.0
    %851 = vmatpush2.msra.mxu0 0.0
    %852 = vmatprep.subr.mxu0 0.0
    %853 = vmatpush2.msra.mxu0 0.0
    %854 = vmatprep.mubr.f32.mxu0 0.0
    %855 = vmatmul.mubr.f32.gmra.mxu0 %v788
    %v856 = vpop.f32.mrf.mxu0
    %v857 = vadd.f32 %v780, %v856
    %v858 = vpop.f32.mrf.mxu0
    %v859 = vadd.f32 %v784, %v858
    %860 = vdwg.mxu0
    %v861 = vxor.u32 %v857, 2147483648
    %v862 = vxor.u32 %v859, 2147483648
    %v863 = vmul.f32 %v861, 1.442695
    %v864 = vpow.pop %v863
    %v865 = vmul.f32 %v862, 1.442695
    %v866 = vpow.pop %v865
    %v867 = vadd.f32 %v864, 1.0
    %v868 = vadd.f32 %v866, 1.0
    %v869 = vrcp.pop %v867
    %v870 = vmul.f32 1.0, %v869
    %v871 = vrcp.pop %v868
    %v872 = vmul.f32 1.0, %v871
    %v873 = vtanh.pop %v859
    %v874 = vmul.f32 %v870, %v764
    %876 = vrot.lane.b32.xlu0 %v873, 64
    %v877 = vpop.permute.xlu0 %876
    %v879 = vmul.f32 %v870, %v877
    %881 = vrot.lane.b32.xlu0 %v879, 64
    %v882 = vpop.permute.xlu0 %881
    %v884 = vadd.f32 %v874, %v882
    %v885 = vtanh.pop %v884
    %887 = vrot.lane.b32.xlu0 %v885, 64
    %v888 = vpop.permute.xlu0 %887
    %v890 = vmul.f32 %v872, %v888
    %s891 = scalar_lea.vmem [#allocation7], %s260
    %v892 = vld [vmem:[%s891] ss:$8 sm:$0x3]
    %s893 = scalar_lea.vmem [#allocation8], %s250
    %v894 = vld [vmem:[%s893] ss:$8 sm:$0x3]
    %v895 = vadd.f32 %v892, %v894
    %v897 = vlaneseq
    %v898 = vshrl.u32 %v897, 7
    %v899 = vsub.s32 0, %v898
    %v900 = vrot.slane %v895, %v899
    %v901 = vlaneseq
    %v902 = vshrl.u32 %v901, 7
    %v903 = vsub.s32 1, %v902
    %v904 = vrot.slane %v895, %v903
    %v908 = vsel %vm138, %v890, 0
    %910 = vmatprep.subr.mxu0 0.0
    %911 = vmatpush1.msra.mxu0 0.0
    %912 = vmatprep.subr.mxu0 0.0
    %913 = vmatpush1.msra.mxu0 0.0
    %914 = vmatprep.subr.mxu0 0.0
    %915 = vmatpush1.msra.mxu0 0.0
    %916 = vmatprep.subr.mxu0 0.0
    %917 = vmatpush1.msra.mxu0 0.0
    %918 = vmatprep.subr.mxu0 0.0
    %919 = vmatpush1.msra.mxu0 0.0
    %920 = vmatprep.subr.mxu0 0.0
    %921 = vmatpush1.msra.mxu0 0.0
    %922 = vmatprep.subr.mxu0 0.0
    %923 = vmatpush1.msra.mxu0 0.0
    %924 = vmatprep.subr.mxu0 0.0
    %925 = vmatpush1.msra.mxu0 0.0
    %926 = vmatprep.subr.mxu0 %v105
    %927 = vmatpush1.msra.mxu0 %v104
    %928 = vmatprep.subr.mxu0 %v103
    %929 = vmatpush1.msra.mxu0 %v102
    %930 = vmatprep.subr.mxu0 %v101
    %931 = vmatpush1.msra.mxu0 %v100
    %932 = vmatprep.subr.mxu0 %v99
    %933 = vmatpush1.msra.mxu0 %v98
    %934 = vmatprep.subr.mxu0 %v97
    %935 = vmatpush1.msra.mxu0 %v96
    %936 = vmatprep.subr.mxu0 %v95
    %937 = vmatpush1.msra.mxu0 %v94
    %938 = vmatprep.subr.mxu0 %v93
    %939 = vmatpush1.msra.mxu0 %v92
    %940 = vmatprep.subr.mxu0 %v91
    %941 = vmatpush1.msra.mxu0 %v90
    %942 = vmatprep.subr.mxu0 0.0
    %943 = vmatpush2.msra.mxu0 0.0
    %944 = vmatprep.subr.mxu0 0.0
    %945 = vmatpush2.msra.mxu0 0.0
    %946 = vmatprep.subr.mxu0 0.0
    %947 = vmatpush2.msra.mxu0 0.0
    %948 = vmatprep.subr.mxu0 0.0
    %949 = vmatpush2.msra.mxu0 0.0
    %950 = vmatprep.subr.mxu0 0.0
    %951 = vmatpush2.msra.mxu0 0.0
    %952 = vmatprep.subr.mxu0 0.0
    %953 = vmatpush2.msra.mxu0 0.0
    %954 = vmatprep.subr.mxu0 0.0
    %955 = vmatpush2.msra.mxu0 0.0
    %956 = vmatprep.subr.mxu0 0.0
    %957 = vmatpush2.msra.mxu0 0.0
    %958 = vmatprep.subr.mxu0 0.0
    %959 = vmatpush2.msra.mxu0 0.0
    %960 = vmatprep.subr.mxu0 0.0
    %961 = vmatpush2.msra.mxu0 0.0
    %962 = vmatprep.subr.mxu0 0.0
    %963 = vmatpush2.msra.mxu0 0.0
    %964 = vmatprep.subr.mxu0 0.0
    %965 = vmatpush2.msra.mxu0 0.0
    %966 = vmatprep.subr.mxu0 0.0
    %967 = vmatpush2.msra.mxu0 0.0
    %968 = vmatprep.subr.mxu0 0.0
    %969 = vmatpush2.msra.mxu0 0.0
    %970 = vmatprep.subr.mxu0 0.0
    %971 = vmatpush2.msra.mxu0 0.0
    %972 = vmatprep.subr.mxu0 0.0
    %973 = vmatpush2.msra.mxu0 0.0
    %974 = vmatprep.mubr.f32.mxu0 0.0
    %975 = vmatmul.mubr.f32.gmra.mxu0 %v908
    %v976 = vpop.f32.mrf.mxu0
    %v977 = vadd.f32 %v900, %v976
    %v978 = vpop.f32.mrf.mxu0
    %v979 = vadd.f32 %v904, %v978
    %980 = vdwg.mxu0
    %v981 = vxor.u32 %v977, 2147483648
    %v982 = vxor.u32 %v979, 2147483648
    %v983 = vmul.f32 %v981, 1.442695
    %v984 = vpow.pop %v983
    %v985 = vmul.f32 %v982, 1.442695
    %v986 = vpow.pop %v985
    %v987 = vadd.f32 %v984, 1.0
    %v988 = vadd.f32 %v986, 1.0
    %v989 = vrcp.pop %v987
    %v990 = vmul.f32 1.0, %v989
    %v991 = vrcp.pop %v988
    %v992 = vmul.f32 1.0, %v991
    %v993 = vtanh.pop %v979
    %v994 = vmul.f32 %v990, %v884
    %996 = vrot.lane.b32.xlu0 %v993, 64
    %v997 = vpop.permute.xlu0 %996
    %v999 = vmul.f32 %v990, %v997
    %1001 = vrot.lane.b32.xlu0 %v999, 64
    %v1002 = vpop.permute.xlu0 %1001
    %v1004 = vadd.f32 %v994, %v1002
    %v1005 = vtanh.pop %v1004
    %1007 = vrot.lane.b32.xlu0 %v1005, 64
    %v1008 = vpop.permute.xlu0 %1007
    %v1010 = vmul.f32 %v992, %v1008
    %s1011 = scalar_lea.vmem [#allocation7], %s123
    %v1012 = vld [vmem:[%s1011] ss:$8 sm:$0x3]
    %s1013 = scalar_lea.vmem [#allocation8], %s113
    %v1014 = vld [vmem:[%s1013] ss:$8 sm:$0x3]
    %v1015 = vadd.f32 %v1012, %v1014
    %v1017 = vlaneseq
    %v1018 = vshrl.u32 %v1017, 7
    %v1019 = vsub.s32 0, %v1018
    %v1020 = vrot.slane %v1015, %v1019
    %v1021 = vlaneseq
    %v1022 = vshrl.u32 %v1021, 7
    %v1023 = vsub.s32 1, %v1022
    %v1024 = vrot.slane %v1015, %v1023
    %v1028 = vsel %vm138, %v1010, 0
    %1030 = vmatprep.subr.mxu0 0.0
    %1031 = vmatpush1.msra.mxu0 0.0
    %1032 = vmatprep.subr.mxu0 0.0
    %1033 = vmatpush1.msra.mxu0 0.0
    %1034 = vmatprep.subr.mxu0 0.0
    %1035 = vmatpush1.msra.mxu0 0.0
    %1036 = vmatprep.subr.mxu0 0.0
    %1037 = vmatpush1.msra.mxu0 0.0
    %1038 = vmatprep.subr.mxu0 0.0
    %1039 = vmatpush1.msra.mxu0 0.0
    %1040 = vmatprep.subr.mxu0 0.0
    %1041 = vmatpush1.msra.mxu0 0.0
    %1042 = vmatprep.subr.mxu0 0.0
    %1043 = vmatpush1.msra.mxu0 0.0
    %1044 = vmatprep.subr.mxu0 0.0
    %1045 = vmatpush1.msra.mxu0 0.0
    %1046 = vmatprep.subr.mxu0 %v105
    %1047 = vmatpush1.msra.mxu0 %v104
    %1048 = vmatprep.subr.mxu0 %v103
    %1049 = vmatpush1.msra.mxu0 %v102
    %1050 = vmatprep.subr.mxu0 %v101
    %1051 = vmatpush1.msra.mxu0 %v100
    %1052 = vmatprep.subr.mxu0 %v99
    %1053 = vmatpush1.msra.mxu0 %v98
    %1054 = vmatprep.subr.mxu0 %v97
    %1055 = vmatpush1.msra.mxu0 %v96
    %1056 = vmatprep.subr.mxu0 %v95
    %1057 = vmatpush1.msra.mxu0 %v94
    %1058 = vmatprep.subr.mxu0 %v93
    %1059 = vmatpush1.msra.mxu0 %v92
    %1060 = vmatprep.subr.mxu0 %v91
    %1061 = vmatpush1.msra.mxu0 %v90
    %1062 = vmatprep.subr.mxu0 0.0
    %1063 = vmatpush2.msra.mxu0 0.0
    %1064 = vmatprep.subr.mxu0 0.0
    %1065 = vmatpush2.msra.mxu0 0.0
    %1066 = vmatprep.subr.mxu0 0.0
    %1067 = vmatpush2.msra.mxu0 0.0
    %1068 = vmatprep.subr.mxu0 0.0
    %1069 = vmatpush2.msra.mxu0 0.0
    %1070 = vmatprep.subr.mxu0 0.0
    %1071 = vmatpush2.msra.mxu0 0.0
    %1072 = vmatprep.subr.mxu0 0.0
    %1073 = vmatpush2.msra.mxu0 0.0
    %1074 = vmatprep.subr.mxu0 0.0
    %1075 = vmatpush2.msra.mxu0 0.0
    %1076 = vmatprep.subr.mxu0 0.0
    %1077 = vmatpush2.msra.mxu0 0.0
    %1078 = vmatprep.subr.mxu0 0.0
    %1079 = vmatpush2.msra.mxu0 0.0
    %1080 = vmatprep.subr.mxu0 0.0
    %1081 = vmatpush2.msra.mxu0 0.0
    %1082 = vmatprep.subr.mxu0 0.0
    %1083 = vmatpush2.msra.mxu0 0.0
    %1084 = vmatprep.subr.mxu0 0.0
    %1085 = vmatpush2.msra.mxu0 0.0
    %1086 = vmatprep.subr.mxu0 0.0
    %1087 = vmatpush2.msra.mxu0 0.0
    %1088 = vmatprep.subr.mxu0 0.0
    %1089 = vmatpush2.msra.mxu0 0.0
    %1090 = vmatprep.subr.mxu0 0.0
    %1091 = vmatpush2.msra.mxu0 0.0
    %1092 = vmatprep.subr.mxu0 0.0
    %1093 = vmatpush2.msra.mxu0 0.0
    %1094 = vmatprep.mubr.f32.mxu0 0.0
    %1095 = vmatmul.mubr.f32.gmra.mxu0 %v1028
    %v1096 = vpop.f32.mrf.mxu0
    %v1097 = vadd.f32 %v1020, %v1096
    %v1098 = vpop.f32.mrf.mxu0
    %v1099 = vadd.f32 %v1024, %v1098
    %1100 = vdwg.mxu0
    %v1101 = vxor.u32 %v1097, 2147483648
    %v1102 = vxor.u32 %v1099, 2147483648
    %v1103 = vmul.f32 %v1101, 1.442695
    %v1104 = vpow.pop %v1103
    %v1105 = vmul.f32 %v1102, 1.442695
    %v1106 = vpow.pop %v1105
    %v1107 = vadd.f32 %v1104, 1.0
    %v1108 = vadd.f32 %v1106, 1.0
    %v1109 = vrcp.pop %v1107
    %v1110 = vmul.f32 1.0, %v1109
    %v1111 = vrcp.pop %v1108
    %v1112 = vmul.f32 1.0, %v1111
    %v1113 = vtanh.pop %v1099
    %v1114 = vmul.f32 %v1110, %v1004
    %1116 = vrot.lane.b32.xlu0 %v1113, 64
    %v1117 = vpop.permute.xlu0 %1116
    %v1119 = vmul.f32 %v1110, %v1117
    %1121 = vrot.lane.b32.xlu0 %v1119, 64
    %v1122 = vpop.permute.xlu0 %1121
    %v1124 = vadd.f32 %v1114, %v1122
    %v1125 = vtanh.pop %v1124
    %1127 = vrot.lane.b32.xlu0 %v1125, 64
    %v1128 = vpop.permute.xlu0 %1127
    %v1130 = vmul.f32 %v1112, %v1128
    %v1131 = vlaneseq
    %v1132 = vand.u32 %v1131, 127
    %vm1133 = vcmp.lt.s32.totalorder %v1132, 32
    %v1134 = vsel %vm1133, %v242, %v1130
    %vm1135 = vcmask 516096
    %1136 = vst.msk [vmem:[#allocation2] sm:$0x1] %vm1135, %v1134
    %v1137 = vsel %vm1133, %v378, %v1010
    %1138 = vst.msk [vmem:[#allocation2 + $0x1] sm:$0x1] %vm1135, %v1137
    %v1139 = vsel %vm1133, %v514, %v890
    %1140 = vst.msk [vmem:[#allocation2 + $0x2] sm:$0x1] %vm1135, %v1139
    %v1141 = vsel %vm1133, %v650, %v770
    %1142 = vst.msk [vmem:[#allocation2 + $0x3] sm:$0x1] %vm1135, %v1141
    %v1143 = vsel %vm1133, %v770, %v650
    %1144 = vst.msk [vmem:[#allocation2 + $0x4] sm:$0x1] %vm1135, %v1143
    %v1145 = vsel %vm1133, %v890, %v514
    %1146 = vst.msk [vmem:[#allocation2 + $0x5] sm:$0x1] %vm1135, %v1145
    %v1147 = vsel %vm1133, %v1010, %v378
    %1148 = vst.msk [vmem:[#allocation2 + $0x6] sm:$0x1] %vm1135, %v1147
    %v1149 = vsel %vm1133, %v1130, %v242
    %1150 = vst.msk [vmem:[#allocation2 + $0x7] sm:$0x1] %vm1135, %v1149
    %v1151 = vld [vmem:[#allocation2] sm:$0xff]
    %v1152 = vld [vmem:[#allocation11] sm:$0xff]
    %v1153 = vld [vmem:[#allocation11 + $0x8] sm:$0xff]
    %v1154 = vld [vmem:[#allocation11 + $0x10] sm:$0xff]
    %v1155 = vld [vmem:[#allocation11 + $0x18] sm:$0xff]
    %v1156 = vld [vmem:[#allocation11 + $0x20] sm:$0xff]
    %v1157 = vld [vmem:[#allocation11 + $0x28] sm:$0xff]
    %v1158 = vld [vmem:[#allocation11 + $0x30] sm:$0xff]
    %v1159 = vld [vmem:[#allocation11 + $0x38] sm:$0xff]
    %v1160 = vld [vmem:[%s5] sm:$0x1]
    %v1162 = vlaneseq
    %v1163 = vshrl.u32 %v1162, 7
    %v1164 = vsub.s32 0, %v1163
    %v1165 = vrot.slane %v1160, %v1164
    %v1168 = vsel %vm138, %v1151, 0
    %1170 = vmatprep.subr.mxu0 0.0
    %1171 = vmatpush1.msra.mxu0 0.0
    %1172 = vmatprep.subr.mxu0 0.0
    %1173 = vmatpush1.msra.mxu0 0.0
    %1174 = vmatprep.subr.mxu0 0.0
    %1175 = vmatpush1.msra.mxu0 0.0
    %1176 = vmatprep.subr.mxu0 0.0
    %1177 = vmatpush1.msra.mxu0 0.0
    %1178 = vmatprep.subr.mxu0 0.0
    %1179 = vmatpush1.msra.mxu0 0.0
    %1180 = vmatprep.subr.mxu0 0.0
    %1181 = vmatpush1.msra.mxu0 0.0
    %1182 = vmatprep.subr.mxu0 0.0
    %1183 = vmatpush1.msra.mxu0 0.0
    %1184 = vmatprep.subr.mxu0 0.0
    %1185 = vmatpush1.msra.mxu0 0.0
    %1186 = vmatprep.subr.mxu0 0.0
    %1187 = vmatpush1.msra.mxu0 %v1159
    %1188 = vmatprep.subr.mxu0 0.0
    %1189 = vmatpush1.msra.mxu0 %v1158
    %1190 = vmatprep.subr.mxu0 0.0
    %1191 = vmatpush1.msra.mxu0 %v1157
    %1192 = vmatprep.subr.mxu0 0.0
    %1193 = vmatpush1.msra.mxu0 %v1156
    %1194 = vmatprep.subr.mxu0 0.0
    %1195 = vmatpush1.msra.mxu0 %v1155
    %1196 = vmatprep.subr.mxu0 0.0
    %1197 = vmatpush1.msra.mxu0 %v1154
    %1198 = vmatprep.subr.mxu0 0.0
    %1199 = vmatpush1.msra.mxu0 %v1153
    %1200 = vmatprep.subr.mxu0 0.0
    %1201 = vmatpush1.msra.mxu0 %v1152
    %1202 = vmatprep.subr.mxu0 0.0
    %1203 = vmatpush2.msra.mxu0 0.0
    %1204 = vmatprep.subr.mxu0 0.0
    %1205 = vmatpush2.msra.mxu0 0.0
    %1206 = vmatprep.subr.mxu0 0.0
    %1207 = vmatpush2.msra.mxu0 0.0
    %1208 = vmatprep.subr.mxu0 0.0
    %1209 = vmatpush2.msra.mxu0 0.0
    %1210 = vmatprep.subr.mxu0 0.0
    %1211 = vmatpush2.msra.mxu0 0.0
    %1212 = vmatprep.subr.mxu0 0.0
    %1213 = vmatpush2.msra.mxu0 0.0
    %1214 = vmatprep.subr.mxu0 0.0
    %1215 = vmatpush2.msra.mxu0 0.0
    %1216 = vmatprep.subr.mxu0 0.0
    %1217 = vmatpush2.msra.mxu0 0.0
    %1218 = vmatprep.subr.mxu0 0.0
    %1219 = vmatpush2.msra.mxu0 0.0
    %1220 = vmatprep.subr.mxu0 0.0
    %1221 = vmatpush2.msra.mxu0 0.0
    %1222 = vmatprep.subr.mxu0 0.0
    %1223 = vmatpush2.msra.mxu0 0.0
    %1224 = vmatprep.subr.mxu0 0.0
    %1225 = vmatpush2.msra.mxu0 0.0
    %1226 = vmatprep.subr.mxu0 0.0
    %1227 = vmatpush2.msra.mxu0 0.0
    %1228 = vmatprep.subr.mxu0 0.0
    %1229 = vmatpush2.msra.mxu0 0.0
    %1230 = vmatprep.subr.mxu0 0.0
    %1231 = vmatpush2.msra.mxu0 0.0
    %1232 = vmatprep.subr.mxu0 0.0
    %1233 = vmatpush2.msra.mxu0 0.0
    %1234 = vmatprep.mubr.f32.mxu0 0.0
    %1235 = vmatmul.mubr.f32.gmra.mxu0 %v1168
    %v1236 = vpop.f32.mrf.mxu0
    %v1237 = vadd.f32 %v1165, %v1236
    %v1238 = vpop.f32.mrf.mxu0
    %1239 = vdwg.mxu0
    %1240 = vmax.xlane.f32.xlu0 %v1237
    %v1241 = vpop.xlane.xlu0 %1240
    %v1242 = vsub.f32 %v1237, %v1241
    %v1243 = vmul.f32 %v1242, 1.442695
    %v1244 = vpow.pop %v1243
    %1245 = vadd.xlane.f32.xlu0 %v1244
    %v1246 = vpop.xlane.xlu0 %1245
    %v1247 = vlog2.pop %v1246
    %v1248 = vmul.f32 %v1247, 0.6931472
    %v1249 = vadd.f32 %v1248, %v1241
    %v1250 = vsub.f32 %v1237, %v1249
    %1251 = vst [vmem:[#allocation13] sm:$0xff] %v1250
    // Predicated region
    $region46: #{forward.1} parent=1 // pred_check
      _
    $region47: #{forward.1} parent=1 // pred_check_branch
      %1253 = sbr.rel (0) target = $region49
    $region48: #{forward.1} parent=1 // pred_region
      %s1255 = ssub.s32 128, 128
      %1256 = vsyncadd [#allocation5], %s1255
      %s1258 = sshll.u32 [#allocation13], 4
      %s1259 = int_to_ptr.vmem [resolvable:$true] %s1258
      %1261 = dma.vmem_to_hbm [thread:$0]  %s1259, 128, %s6, [#allocation5]
    $region49: #{forward.1} parent=1 // pred_fallthru
      _
    // Predicated region
    $region50: #{forward.1} parent=1 // pred_check
      _
    $region51: #{forward.1} parent=1 // pred_check_branch
      %1263 = sbr.rel (0) target = $region53
    $region52: #{forward.1} parent=1 // pred_region
      %1264 = dma.done [#allocation5], 128
    $region53: #{forward.1} parent=1 // pred_fallthru
      _
    %1265 = vsyncpa [#allocation4], 1
    %1266 = vsyncpa [#allocation9], 1
    %1267 = vsyncpa [#allocation12], 1
    %1268 = vsyncpa [#allocation5], 1
    %1269 = vsyncpa [#allocation6], 1

</llo_original>
